<compile_context>
chip_gen: v5e
topology: v5e:2x2
jax: 0.10.0
libtpu: 0.0.40
codegen_flags: <defaults>
</compile_context>

<pallas_src>
from functools import partial

import jax
import jax.numpy as jnp
from jax import lax
from jax.experimental import pallas as pl
from jax.experimental.pallas import tpu as pltpu


def _round_up(x, m):
    return (x + m - 1) // m * m


# ------------------------- VMEM budgeting / tiling ---------------------------
def _vmem_limit_bytes():
    """Scoped VMEM limit with headroom, derived from the chip (fallback: 128 MiB)."""
    cap = 128 << 20
    try:
        info = pltpu.get_tpu_info()
        cap = int(getattr(info, "vmem_capacity_bytes", cap))
    except Exception:
        pass
    # ~5/8 of physical, capped at 80 MiB: v7x (64 MiB) -> 40 MiB, v5e/v6e -> 80 MiB.
    return max(16 << 20, min(cap * 5 // 8, 80 << 20))


def _pick_tiles(num_nodes, num_rels, out_pad, budget_bytes):
    """Pick (tm, n_pad, tk, k_pad). Budget covers 2x bf16 A block + 2x bf16 M block
    + 2x f32 out block + f32 epilogue temps."""
    n128 = _round_up(max(num_nodes, 1), 128)
    tm = min(512, n128)
    # shrink dst tile (multiples of 128) until at least a 128-wide k tile fits
    while tm > 128 and budget_bytes - 16 * tm * out_pad < 4 * 128 * (tm + out_pad):
        tm -= 128
    n_pad = _round_up(num_nodes, tm)
    k_total = num_rels * n_pad
    rem = max(budget_bytes - 16 * tm * out_pad, 4 * 128 * (tm + out_pad))
    tk = max(128, rem // (4 * (tm + out_pad)) // 128 * 128)
    tk = min(tk, _round_up(k_total, 128))
    k_pad = _round_up(k_total, tk)
    return int(tm), int(n_pad), int(tk), int(k_pad)


# ----------------------------- Pallas kernel ---------------------------------
def _rgcn_agg_kernel(fi_ref, fk_ref, nz_ref, a_ref, m_ref, o_ref, *,
                     activation, valid_out):
    """Grid step (dst tile i, k tile): o_tile (+)= A2_tile @ M2_tile.

    fi_ref/fk_ref/nz_ref : SMEM scalar-prefetch (block-fetch schedule + nonzero map)
    a_ref : (tm, tk)      bf16 packed adjacency tile (relation folded into k)
    m_ref : (tk, out_pad) bf16 packed messages tile
    o_ref : (tm, out_pad) f32 output tile (accumulator-resident over the k axis)
    """
    k = pl.program_id(1)
    nk = pl.num_programs(1)
    t = pl.program_id(0) * nk + k
    nz = nz_ref[t] != 0
    first = k == 0

    @pl.when(jnp.logical_and(first, jnp.logical_not(nz)))
    def _():
        o_ref[...] = jnp.zeros_like(o_ref)

    @pl.when(jnp.logical_and(first, nz))
    def _():  # direct store: skip the zero-init read-modify-write pass
        o_ref[...] = jnp.dot(a_ref[...], m_ref[...],
                             preferred_element_type=jnp.float32)

    @pl.when(jnp.logical_and(jnp.logical_not(first), nz))
    def _():
        o_ref[...] += jnp.dot(a_ref[...], m_ref[...],
                              preferred_element_type=jnp.float32)

    @pl.when(k == nk - 1)
    def _():
        h = o_ref[...]
        if activation == "relu":
            h = jnp.maximum(h, 0.0)
        elif activation == "softmax":  # softmax over feature dim (dim=1)
            lane = lax.broadcasted_iota(jnp.int32, h.shape, 1)
            h = jnp.where(lane < valid_out, h, -jnp.inf)  # mask padded lanes
            h = h - jnp.max(h, axis=1, keepdims=True)
            e = jnp.exp(h)
            h = e / jnp.sum(e, axis=1, keepdims=True)     # exact normalization
        o_ref[...] = h


def rgcn_aggregate(A2, M2, fetch_i, fetch_k, nz, activation, valid_out,
                   tm, tk, vmem_limit):
    """A2: (n_pad, k_pad) bf16, M2: (k_pad, out_pad) bf16 -> (n_pad, out_pad) f32."""
    n_pad, k_pad = A2.shape
    out_pad = M2.shape[-1]
    nt, ktl = n_pad // tm, k_pad // tk
    elem = jnp.dtype(A2.dtype).itemsize

    cost = pl.CostEstimate(
        flops=2 * n_pad * k_pad * out_pad,
        transcendentals=n_pad * out_pad if activation == "softmax" else 0,
        bytes_accessed=(n_pad * k_pad * elem            # A streamed (dense bound)
                        + nt * k_pad * out_pad * elem   # M re-read per dst tile
                        + n_pad * out_pad * 4),         # f32 output
    )

    def a_map(i, k, fi, fk, nzr):  # empty tiles repeat the last fetched block
        t = i * ktl + k
        return (fi[t], fk[t])

    def m_map(i, k, fi, fk, nzr):
        return (fk[i * ktl + k], 0)

    return pl.pallas_call(
        partial(_rgcn_agg_kernel, activation=activation, valid_out=valid_out),
        out_shape=jax.ShapeDtypeStruct((n_pad, out_pad), jnp.float32),
        grid_spec=pltpu.PrefetchScalarGridSpec(
            num_scalar_prefetch=3,
            grid=(nt, ktl),  # dst tiles (parallel) x k tiles (reduction, innermost)
            in_specs=[
                pl.BlockSpec((tm, tk), a_map),
                pl.BlockSpec((tk, out_pad), m_map),
            ],
            out_specs=pl.BlockSpec((tm, out_pad), lambda i, k, fi, fk, nzr: (i, 0)),
        ),
        compiler_params=pltpu.CompilerParams(
            dimension_semantics=("parallel", "arbitrary"),
            vmem_limit_bytes=vmem_limit,
        ),
        cost_estimate=cost,
    )(fetch_i, fetch_k, nz, A2, M2)


# ------------------------- Parameter construction ----------------------------
def _xavier_uniform(key, shape):
    fan_in, fan_out = shape[-2], shape[-1]
    bound = jnp.sqrt(6.0 / (fan_in + fan_out)).astype(jnp.float32)
    return jax.random.uniform(key, shape, jnp.float32, -bound, bound)


def make_layer_params(key, in_feat, out_feat, num_rels, num_bases):
    """Mirrors RGCNLayer basis-decomposition parameters -> W: (R, in_feat, out_feat)."""
    nb = num_bases if 0 < num_bases < num_rels else num_rels
    k1, k2 = jax.random.split(key)
    basis = _xavier_uniform(k1, (nb, in_feat, out_feat))
    if nb < num_rels:
        w_comp = _xavier_uniform(k2, (num_rels, nb))
        w = basis.reshape(in_feat, nb, out_feat)
        w = jnp.einsum("rb,ibo->iro", w_comp, w)
        W = w.reshape(num_rels, in_feat, out_feat)
    else:
        W = basis
    return W


# -------------------------------- Forward ------------------------------------
def rgcnt_forward(A, params, activations, compute_dtype=jnp.bfloat16):
    """Full RGCNTModel.forward. A: (R, N, N) dense edge-norm adjacency."""
    R, N, _ = A.shape
    assert params[0].shape[1] == N, "layer-0 identity shortcut needs in_feat == num_nodes"

    out_pad_max = max(_round_up(int(W.shape[-1]), 128) for W in params)
    vmem_limit = _vmem_limit_bytes()
    tm, n_pad, tk, k_pad = _pick_tiles(N, R, out_pad_max, (vmem_limit * 3) // 4)
    nt, ktl = n_pad // tm, k_pad // tk
    k_real = R * n_pad

    # Pack adjacency once (shared by all layers): A2[i, r*n_pad + j] = A[r, i, j].
    Ab = jnp.pad(A.astype(compute_dtype), ((0, 0), (0, n_pad - N), (0, n_pad - N)))
    A2 = jnp.transpose(Ab, (1, 0, 2)).reshape(n_pad, k_real)
    A2 = jnp.pad(A2, ((0, 0), (0, k_pad - k_real)))

    # Block-nonzero map + "block to fetch at grid step t": empty tiles repeat the
    # previous fetch so their DMA is elided (contents are compute-gated anyway).
    nz = jnp.any(A2.reshape(nt, tm, ktl, tk) != 0, axis=(1, 3)).reshape(-1)
    t_idx = jnp.arange(nt * ktl, dtype=jnp.int32)
    last = jnp.maximum(lax.cummax(jnp.where(nz, t_idx, -1), axis=0), 0)
    fetch_i = (last // ktl).astype(jnp.int32)
    fetch_k = (last % ktl).astype(jnp.int32)
    nz_i32 = nz.astype(jnp.int32)

    H = None  # None => one-hot identity features (input-layer shortcut)
    for W, act in zip(params, activations):
        out_f = int(W.shape[-1])
        out_pad = _round_up(out_f, 128)
        if H is None:
            M = W.astype(compute_dtype)              # H0 = I_N  =>  M_r = W_r
        else:
            M = jnp.einsum("nf,rfo->rno", H.astype(compute_dtype),
                           W.astype(compute_dtype),
                           preferred_element_type=jnp.float32).astype(compute_dtype)
        # Pack messages: M2[r*n_pad + j, :] = M[r, j, :]
        Mp = jnp.pad(M, ((0, 0), (0, n_pad - M.shape[1]), (0, out_pad - out_f)))
        M2 = jnp.pad(Mp.reshape(k_real, out_pad), ((0, k_pad - k_real), (0, 0)))
        H = rgcn_aggregate(A2, M2, fetch_i, fetch_k, nz_i32, act, out_f,
                           tm, tk, vmem_limit)[:N, :out_f]
    return H


# ---------------------------------- Demo -------------------------------------
if __name__ == "__main__":
    num_nodes, h_dim, out_dim = 16, 32, 8
    num_rels, num_bases, num_hidden_layers = 4, 2, 1
    temperature = 1.0

    root = jax.random.PRNGKey(0)
    kg, kp = jax.random.split(root)

    # Deterministic synthetic graph: per-relation dense adjacency with 1/in-degree norm.
    mask = (jax.random.uniform(kg, (num_rels, num_nodes, num_nodes)) < 0.3).astype(jnp.float32)
    in_deg = jnp.maximum(jnp.sum(mask, axis=(0, 2), keepdims=True), 1.0)
    A = mask / in_deg  # A[r, i, j] = norm of edge j -> i under relation r

    # input (num_nodes->h_dim, relu), hidden (h_dim->h_dim, relu), output (h_dim->out_dim, softmax)
    dims = [(num_nodes, h_dim)] + [(h_dim, h_dim)] * num_hidden_layers + [(h_dim, out_dim)]
    activations = ["relu"] * (1 + num_hidden_layers) + ["softmax"]
    keys = jax.random.split(kp, len(dims))
    params = [make_layer_params(k, i, o, num_rels, num_bases) for k, (i, o) in zip(keys, dims)]

    # Temperature parameter of RGCNTModel (not used in forward).
    inv_temperature = jnp.array([1.0 / temperature], dtype=jnp.float32)

    out = jax.block_until_ready(rgcnt_forward(A, params, activations))

    # Reference 1: same math as the kernel (bf16-rounded operands, f32 accumulate).
    def ref_forward_matched(A, params, activations):
        bf = jnp.bfloat16
        Ab = A.astype(bf).astype(jnp.float32)
        H = None
        for W, act in zip(params, activations):
            if H is None:
                M = W.astype(bf)
            else:
                M = jnp.einsum("nf,rfo->rno", H.astype(bf), W.astype(bf),
                               preferred_element_type=jnp.float32).astype(bf)
            H = jnp.einsum("rij,rjk->ik", Ab, M.astype(jnp.float32))
            H = jnp.maximum(H, 0.0) if act == "relu" else jax.nn.softmax(H, axis=1)
        return H

    # Reference 2: full-precision semantics of the PyTorch module.
    def ref_forward_f32(A, params, activations):
        H = jnp.eye(A.shape[1], dtype=jnp.float32)
        for W, act in zip(params, activations):
            H = jnp.einsum("rij,jk,rkl->il", A, H, W)
            H = jnp.maximum(H, 0.0) if act == "relu" else jax.nn.softmax(H, axis=1)
        return H

    ref_m = ref_forward_matched(A, params, activations)
    ref_f = ref_forward_f32(A, params, activations)

    assert out.shape == (num_nodes, out_dim)
    assert jnp.allclose(out, ref_m, atol=2e-3, rtol=2e-3), float(jnp.max(jnp.abs(out - ref_m)))
    assert jnp.allclose(out, ref_f, atol=5e-2, rtol=5e-2), float(jnp.max(jnp.abs(out - ref_f)))
    print("KERNEL_OK")
</pallas_src>

<mosaic_0001>
module attributes {stable_mosaic.version = 11 : i64} {
  func.func @_rgcn_agg_kernel(%arg0: i32, %arg1: i32, %arg2: memref<1xi32, #tpu.memory_space<smem>>, %arg3: memref<1xi32, #tpu.memory_space<smem>>, %arg4: memref<1xi32, #tpu.memory_space<smem>>, %arg5: memref<128x512xbf16, #tpu.memory_space<vmem>>, %arg6: memref<512x128xbf16, #tpu.memory_space<vmem>>, %arg7: memref<128x128xf32, #tpu.memory_space<vmem>>) attributes {dimension_semantics = [#tpu.dimension_semantics<parallel>, #tpu.dimension_semantics<arbitrary>], iteration_bounds = array<i64: 1, 1>, scalar_prefetch = 3 : i64, scratch_operands = 0 : i64, tpu.core_type = #tpu.core_type<tc>, window_params = [{transform_indices = @transform_0, window_bounds = array<i64: 128, 512>}, {transform_indices = @transform_1, window_bounds = array<i64: 512, 128>}, {transform_indices = @transform_2, window_bounds = array<i64: 128, 128>}]} {
    %c1_i32 = arith.constant 1 : i32
    %0 = arith.muli %arg0, %c1_i32 : i32
    %1 = arith.addi %0, %arg1 : i32
    %2 = arith.index_cast %1 : i32 to index
    %3 = memref.load %arg4[%2] : memref<1xi32, #tpu.memory_space<smem>>
    %c0_i32 = arith.constant 0 : i32
    %4 = arith.cmpi ne, %3, %c0_i32 : i32
    %c0_i32_0 = arith.constant 0 : i32
    %5 = arith.cmpi eq, %arg1, %c0_i32_0 : i32
    %true = arith.constant true
    %6 = arith.xori %4, %true : i1
    %7 = arith.andi %5, %6 : i1
    %8 = arith.extui %7 : i1 to i32
    %c0_i32_1 = arith.constant 0 : i32
    %9 = arith.cmpi ne, %8, %c0_i32_1 : i32
    scf.if %9 {
      %cst = arith.constant 0.000000e+00 : f32
      %20 = vector.broadcast %cst : f32 to vector<128x128xf32>
      %c0 = arith.constant 0 : index
      %c0_7 = arith.constant 0 : index
      %21 = vector.load %arg7[%c0, %c0_7] : memref<128x128xf32, #tpu.memory_space<vmem>>, vector<128x128xf32>
      tpu.vector_store %arg7[%c0, %c0_7], %20 {strides = array<i32>} : memref<128x128xf32, #tpu.memory_space<vmem>>, vector<128x128xf32>,
    } else {
    }
    %10 = arith.andi %5, %4 : i1
    %11 = arith.extui %10 : i1 to i32
    %c0_i32_2 = arith.constant 0 : i32
    %12 = arith.cmpi ne, %11, %c0_i32_2 : i32
    scf.if %12 {
      %c0 = arith.constant 0 : index
      %c0_7 = arith.constant 0 : index
      %20 = vector.load %arg5[%c0, %c0_7] : memref<128x512xbf16, #tpu.memory_space<vmem>>, vector<128x512xbf16>
      %c0_8 = arith.constant 0 : index
      %c0_9 = arith.constant 0 : index
      %21 = vector.load %arg6[%c0_8, %c0_9] : memref<512x128xbf16, #tpu.memory_space<vmem>>, vector<512x128xbf16>
      %cst = arith.constant dense<0.000000e+00> : vector<128x128xf32>
      %22 = tpu.matmul %20, %21, %cst {dimension_numbers = #tpu.dot_dimension_numbers<[1], [0], [0], [1], [0, 0, 1, 1], [], []>} : vector<128x512xbf16>, vector<512x128xbf16>, vector<128x128xf32> -> vector<128x128xf32>
      %c0_10 = arith.constant 0 : index
      %c0_11 = arith.constant 0 : index
      %23 = vector.load %arg7[%c0_10, %c0_11] : memref<128x128xf32, #tpu.memory_space<vmem>>, vector<128x128xf32>
      tpu.vector_store %arg7[%c0_10, %c0_11], %22 {strides = array<i32>} : memref<128x128xf32, #tpu.memory_space<vmem>>, vector<128x128xf32>,
    } else {
    }
    %true_3 = arith.constant true
    %13 = arith.xori %5, %true_3 : i1
    %14 = arith.andi %13, %4 : i1
    %15 = arith.extui %14 : i1 to i32
    %c0_i32_4 = arith.constant 0 : i32
    %16 = arith.cmpi ne, %15, %c0_i32_4 : i32
    scf.if %16 {
      %c0 = arith.constant 0 : index
      %c0_7 = arith.constant 0 : index
      %20 = vector.load %arg7[%c0, %c0_7] : memref<128x128xf32, #tpu.memory_space<vmem>>, vector<128x128xf32>
      %c0_8 = arith.constant 0 : index
      %c0_9 = arith.constant 0 : index
      %21 = vector.load %arg5[%c0_8, %c0_9] : memref<128x512xbf16, #tpu.memory_space<vmem>>, vector<128x512xbf16>
      %c0_10 = arith.constant 0 : index
      %c0_11 = arith.constant 0 : index
      %22 = vector.load %arg6[%c0_10, %c0_11] : memref<512x128xbf16, #tpu.memory_space<vmem>>, vector<512x128xbf16>
      %cst = arith.constant dense<0.000000e+00> : vector<128x128xf32>
      %23 = tpu.matmul %21, %22, %cst {dimension_numbers = #tpu.dot_dimension_numbers<[1], [0], [0], [1], [0, 0, 1, 1], [], []>} : vector<128x512xbf16>, vector<512x128xbf16>, vector<128x128xf32> -> vector<128x128xf32>
      %24 = arith.addf %20, %23 : vector<128x128xf32>
      %c0_12 = arith.constant 0 : index
      %c0_13 = arith.constant 0 : index
      %25 = vector.load %arg7[%c0_12, %c0_13] : memref<128x128xf32, #tpu.memory_space<vmem>>, vector<128x128xf32>
      tpu.vector_store %arg7[%c0_12, %c0_13], %24 {strides = array<i32>} : memref<128x128xf32, #tpu.memory_space<vmem>>, vector<128x128xf32>,
    } else {
    }
    %c0_i32_5 = arith.constant 0 : i32
    %17 = arith.cmpi eq, %arg1, %c0_i32_5 : i32
    %18 = arith.extui %17 : i1 to i32
    %c0_i32_6 = arith.constant 0 : i32
    %19 = arith.cmpi ne, %18, %c0_i32_6 : i32
    scf.if %19 {
      %c0 = arith.constant 0 : index
      %c0_7 = arith.constant 0 : index
      %20 = vector.load %arg7[%c0, %c0_7] : memref<128x128xf32, #tpu.memory_space<vmem>>, vector<128x128xf32>
      %cst = arith.constant 0.000000e+00 : f32
      %21 = vector.broadcast %cst : f32 to vector<128x128xf32>
      %22 = arith.maximumf %20, %21 : vector<128x128xf32>
      %c0_8 = arith.constant 0 : index
      %c0_9 = arith.constant 0 : index
      %23 = vector.load %arg7[%c0_8, %c0_9] : memref<128x128xf32, #tpu.memory_space<vmem>>, vector<128x128xf32>
      tpu.vector_store %arg7[%c0_8, %c0_9], %22 {strides = array<i32>} : memref<128x128xf32, #tpu.memory_space<vmem>>, vector<128x128xf32>,
    } else {
    }
    return
  }
  func.func @transform_0(%arg0: i32, %arg1: i32, %arg2: memref<1xi32, #tpu.memory_space<smem>>, %arg3: memref<1xi32, #tpu.memory_space<smem>>, %arg4: memref<1xi32, #tpu.memory_space<smem>>) -> (i32, i32) {
    %c1_i32 = arith.constant 1 : i32
    %0 = arith.muli %arg0, %c1_i32 : i32
    %1 = arith.addi %0, %arg1 : i32
    %2 = arith.index_cast %1 : i32 to index
    %3 = memref.load %arg2[%2] : memref<1xi32, #tpu.memory_space<smem>>
    %4 = arith.index_cast %1 : i32 to index
    %5 = memref.load %arg3[%4] : memref<1xi32, #tpu.memory_space<smem>>
    %c0_i32 = arith.constant 0 : i32
    return %3, %5 : i32, i32
  }
  func.func @transform_1(%arg0: i32, %arg1: i32, %arg2: memref<1xi32, #tpu.memory_space<smem>>, %arg3: memref<1xi32, #tpu.memory_space<smem>>, %arg4: memref<1xi32, #tpu.memory_space<smem>>) -> (i32, i32) {
    %c1_i32 = arith.constant 1 : i32
    %0 = arith.muli %arg0, %c1_i32 : i32
    %1 = arith.addi %0, %arg1 : i32
    %2 = arith.index_cast %1 : i32 to index
    %3 = memref.load %arg3[%2] : memref<1xi32, #tpu.memory_space<smem>>
    %c0_i32 = arith.constant 0 : i32
    %c0_i32_0 = arith.constant 0 : i32
    return %3, %c0_i32 : i32, i32
  }
  func.func @transform_2(%arg0: i32, %arg1: i32, %arg2: memref<1xi32, #tpu.memory_space<smem>>, %arg3: memref<1xi32, #tpu.memory_space<smem>>, %arg4: memref<1xi32, #tpu.memory_space<smem>>) -> (i32, i32) {
    %c0_i32 = arith.constant 0 : i32
    %c0_i32_0 = arith.constant 0 : i32
    return %arg0, %c0_i32 : i32, i32
  }
}

</mosaic_0001>

<llo_original>
// kernel: tpu_custom_call.1
$region0: #{tpu_custom_call.1}
  #allocation0 [shape = 'u32[]', space=smem, size = 0x4, offset = 0x4, fixed_abs, tag = 'smem constant byte address 0x4 - core index']
  #allocation1 [shape = 'u32[72,128]{1,0:T(1,128)}', space=vmem, size = 0x9000, scoped, tag = 'internal scratch']
  #allocation2 [shape = 's32[1]{0}', space=sflag, size = 0x4, scoped, tag = 'scoped memory for tpu_custom_call.1']
  #allocation3 [shape = 's32[1]{0:T(128)S(6)}', space=smem, size = 0x200, scoped, tag = 'prefetched SMEM operand 0']
  #allocation4 [shape = 's32[1]{0:T(128)S(6)}', space=smem, size = 0x200, scoped, tag = 'prefetched SMEM operand 1']
  #allocation5 [shape = 's32[1]{0:T(128)S(6)}', space=smem, size = 0x200, scoped, tag = 'prefetched SMEM operand 2']
  %s0 = inlined_call_operand.<no memory space> [shape: s32[1], index: 0, kind: input, shape index: {}]
  %s1 = inlined_call_operand.<no memory space> [shape: s32[1], index: 1, kind: input, shape index: {}]
  %s2 = inlined_call_operand.<no memory space> [shape: s32[1], index: 2, kind: input, shape index: {}]
  %s3 = inlined_call_operand.hbm [shape: bf16[128,512], index: 3, kind: input, shape index: {}]
  %s4 = inlined_call_operand.hbm [shape: bf16[512,128], index: 4, kind: input, shape index: {}]
  %s5 = inlined_call_operand.hbm [shape: f32[128,128], index: 5, kind: output, shape index: {}]
  %s6 = sld [smem:[#allocation0]]
  $region42: #{tpu_custom_call.1} parent=0
    _
  %s8 = ssub.s32 1, %s6
  %s9 = scalar_select 0, %s8, %s6
  %10 = sst [smem:[#allocation3]] %s0
  %11 = sst [smem:[#allocation4]] %s1
  %12 = sst [smem:[#allocation5]] %s2
  $region1: #{tpu_custom_call.1} parent=0
    #allocation6 [shape = 'u8[131072]{0}', space=vmem, size = 0x20000, scoped, tag = 'input window, operand 3, single buffered']
    #allocation7 [shape = 's32[1]{0}', space=sflag, size = 0x4, scoped, tag = 'scoped memory for tpu_custom_call.1']
    #allocation8 [shape = 's32[1]{0}', space=sflag, size = 0x4, scoped, tag = 'scoped memory for tpu_custom_call.1']
    #allocation9 [shape = 'u8[131072]{0}', space=vmem, size = 0x20000, scoped, tag = 'input window, operand 4, single buffered']
    #allocation10 [shape = 's32[1]{0}', space=sflag, size = 0x4, scoped, tag = 'scoped memory for tpu_custom_call.1']
    #allocation11 [shape = 'u8[65536]{0}', space=vmem, size = 0x10000, scoped, tag = 'output window, operand 0, single buffered']
    %13 = vsyncpa [#allocation7], 0
    %14 = vsyncpa [#allocation10], 0
    %15 = vsyncpa [#allocation8], 0
    // Predicated region
    $region2: #{tpu_custom_call.1} parent=1 // pred_check
      _
    $region3: #{tpu_custom_call.1} parent=1 // pred_check_branch
      %17 = sbr.rel (0) target = $region5
    $region4: #{tpu_custom_call.1} parent=1 // pred_region
      %s18 = sadd.s32 0, 0
      %s19 = sld [smem:[#allocation3 + %s18]]
      %s20 = sld [smem:[#allocation4 + %s18]]
      %s21 = smul.u32 16, %s19
      %s22 = smul.u32 4, %s20
      %24 = vsyncadd [#allocation7], 0
      %s25 = smul.addr %s21, 4
      %s26 = sadd.s32 %s22, %s25
      %s27 = smul.addr %s26, 4
      %s28 = scalar_lea.hbm %s3, %s27
      %s29 = sshll.u32 %s28, 4
      %s30 = int_to_ptr.hbm [resolvable:$true] %s29
      %s31 = sshll.u32 [#allocation6], 4
      %s32 = int_to_ptr.vmem [resolvable:$true] %s31
      %37 = dma.hbm_to_vmem [thread:$0]  %s30, 4096, %s32, [#allocation7], 256, 256, 16
    $region5: #{tpu_custom_call.1} parent=1 // pred_fallthru
      _
    // Predicated region
    $region6: #{tpu_custom_call.1} parent=1 // pred_check
      _
    $region7: #{tpu_custom_call.1} parent=1 // pred_check_branch
      %39 = sbr.rel (0) target = $region9
    $region8: #{tpu_custom_call.1} parent=1 // pred_region
      %s40 = sadd.s32 0, 0
      %s41 = sld [smem:[#allocation4 + %s40]]
      %s42 = smul.u32 64, %s41
      %44 = vsyncadd [#allocation10], 0
      %s45 = smul.addr %s42, 4
      %s46 = scalar_lea.hbm %s4, %s45
      %s47 = sshll.u32 %s46, 4
      %s48 = int_to_ptr.hbm [resolvable:$true] %s47
      %s49 = sshll.u32 [#allocation9], 4
      %s50 = int_to_ptr.vmem [resolvable:$true] %s49
      %55 = dma.hbm_to_vmem [thread:$0]  %s48, 4096, %s50, [#allocation10], 64, 64, 4
    $region9: #{tpu_custom_call.1} parent=1 // pred_fallthru
      _
    // Predicated region
    $region10: #{tpu_custom_call.1} parent=1 // pred_check
      _
    $region11: #{tpu_custom_call.1} parent=1 // pred_check_branch
      %57 = sbr.rel (0) target = $region13
    $region12: #{tpu_custom_call.1} parent=1 // pred_region
      %59 = dma.done [#allocation7], 4096
    $region13: #{tpu_custom_call.1} parent=1 // pred_fallthru
      _
    // Predicated region
    $region14: #{tpu_custom_call.1} parent=1 // pred_check
      _
    $region15: #{tpu_custom_call.1} parent=1 // pred_check_branch
      %61 = sbr.rel (0) target = $region17
    $region16: #{tpu_custom_call.1} parent=1 // pred_region
      %63 = dma.done [#allocation10], 4096
    $region17: #{tpu_custom_call.1} parent=1 // pred_fallthru
      _
    %s64 = sadd.s32 0, 0
    %s65 = sld [smem:[#allocation3 + %s64]]
    %s66 = sld [smem:[#allocation4 + %s64]]
    %s67 = smul.u32 16, %s65
    %s68 = smul.u32 4, %s66
    %s69 = sadd.s32 0, 0
    %s70 = sld [smem:[#allocation4 + %s69]]
    %s71 = smul.u32 64, %s70
    %s72 = sadd.s32 0, 0
    %s73 = sld [smem:[#allocation5 + %s72]]
    %p74 = scmp.ne.s32.totalorder %s73, 0
    %p75 = scmp.eq.s32.totalorder 0, 0
    %p76 = scmp.eq.s32.totalorder %s73, 0
    %p77 = pnand %p75, %p76
    %p78 = pneg %p77
    // Predicated region
    $region18: #{tpu_custom_call.1} parent=1 // pred_check
      _
    $region19: #{tpu_custom_call.1} parent=1 // pred_check_branch
      %80 = sbr.rel (%p77) target = $region21
    $region20: #{tpu_custom_call.1} parent=1 // pred_region
      %81 = vst [vmem:[#allocation11] sm:$0xff] 0.0
      %82 = vst [vmem:[#allocation11 + $0x8] sm:$0xff] 0.0
      %83 = vst [vmem:[#allocation11 + $0x10] sm:$0xff] 0.0
      %84 = vst [vmem:[#allocation11 + $0x18] sm:$0xff] 0.0
      %85 = vst [vmem:[#allocation11 + $0x20] sm:$0xff] 0.0
      %86 = vst [vmem:[#allocation11 + $0x28] sm:$0xff] 0.0
      %87 = vst [vmem:[#allocation11 + $0x30] sm:$0xff] 0.0
      %88 = vst [vmem:[#allocation11 + $0x38] sm:$0xff] 0.0
      %89 = vst [vmem:[#allocation11 + $0x40] sm:$0xff] 0.0
      %90 = vst [vmem:[#allocation11 + $0x48] sm:$0xff] 0.0
      %91 = vst [vmem:[#allocation11 + $0x50] sm:$0xff] 0.0
      %92 = vst [vmem:[#allocation11 + $0x58] sm:$0xff] 0.0
      %93 = vst [vmem:[#allocation11 + $0x60] sm:$0xff] 0.0
      %94 = vst [vmem:[#allocation11 + $0x68] sm:$0xff] 0.0
      %95 = vst [vmem:[#allocation11 + $0x70] sm:$0xff] 0.0
      %96 = vst [vmem:[#allocation11 + $0x78] sm:$0xff] 0.0
    $region21: #{tpu_custom_call.1} parent=1 // pred_fallthru
      _
    %p97 = pnand %p75, %p74
    %p98 = pneg %p97
    // Predicated region
    $region22: #{tpu_custom_call.1} parent=1 // pred_check
      _
    $region23: #{tpu_custom_call.1} parent=1 // pred_check_branch
      %100 = sbr.rel (%p97) target = $region25
    $region24: #{tpu_custom_call.1} parent=1 // pred_region
      %v101 = vld [vmem:[#allocation6] sm:$0xff]
      %v102 = vld [vmem:[#allocation6 + $0x8] sm:$0xff]
      %v103 = vld [vmem:[#allocation6 + $0x10] sm:$0xff]
      %v104 = vld [vmem:[#allocation6 + $0x18] sm:$0xff]
      %v105 = vld [vmem:[#allocation6 + $0x20] sm:$0xff]
      %v106 = vld [vmem:[#allocation6 + $0x28] sm:$0xff]
      %v107 = vld [vmem:[#allocation6 + $0x30] sm:$0xff]
      %v108 = vld [vmem:[#allocation6 + $0x38] sm:$0xff]
      %v109 = vld [vmem:[#allocation6 + $0x40] sm:$0xff]
      %v110 = vld [vmem:[#allocation6 + $0x48] sm:$0xff]
      %v111 = vld [vmem:[#allocation6 + $0x50] sm:$0xff]
      %v112 = vld [vmem:[#allocation6 + $0x58] sm:$0xff]
      %v113 = vld [vmem:[#allocation6 + $0x60] sm:$0xff]
      %v114 = vld [vmem:[#allocation6 + $0x68] sm:$0xff]
      %v115 = vld [vmem:[#allocation6 + $0x70] sm:$0xff]
      %v116 = vld [vmem:[#allocation6 + $0x78] sm:$0xff]
      %v117 = vld [vmem:[#allocation6 + $0x80] sm:$0xff]
      %v118 = vld [vmem:[#allocation6 + $0x88] sm:$0xff]
      %v119 = vld [vmem:[#allocation6 + $0x90] sm:$0xff]
      %v120 = vld [vmem:[#allocation6 + $0x98] sm:$0xff]
      %v121 = vld [vmem:[#allocation6 + $0xa0] sm:$0xff]
      %v122 = vld [vmem:[#allocation6 + $0xa8] sm:$0xff]
      %v123 = vld [vmem:[#allocation6 + $0xb0] sm:$0xff]
      %v124 = vld [vmem:[#allocation6 + $0xb8] sm:$0xff]
      %v125 = vld [vmem:[#allocation6 + $0xc0] sm:$0xff]
      %v126 = vld [vmem:[#allocation6 + $0xc8] sm:$0xff]
      %v127 = vld [vmem:[#allocation6 + $0xd0] sm:$0xff]
      %v128 = vld [vmem:[#allocation6 + $0xd8] sm:$0xff]
      %v129 = vld [vmem:[#allocation6 + $0xe0] sm:$0xff]
      %v130 = vld [vmem:[#allocation6 + $0xe8] sm:$0xff]
      %v131 = vld [vmem:[#allocation6 + $0xf0] sm:$0xff]
      %v132 = vld [vmem:[#allocation6 + $0xf8] sm:$0xff]
      %v133 = vld [vmem:[#allocation9] sm:$0xf]
      %v134 = vld [vmem:[#allocation9 + $0x4] sm:$0xf]
      %v135 = vld [vmem:[#allocation9 + $0x8] sm:$0xf]
      %v136 = vld [vmem:[#allocation9 + $0xc] sm:$0xf]
      %v137 = vld [vmem:[#allocation9 + $0x10] sm:$0xf]
      %v138 = vld [vmem:[#allocation9 + $0x14] sm:$0xf]
      %v139 = vld [vmem:[#allocation9 + $0x18] sm:$0xf]
      %v140 = vld [vmem:[#allocation9 + $0x1c] sm:$0xf]
      %v141 = vld [vmem:[#allocation9 + $0x20] sm:$0xf]
      %v142 = vld [vmem:[#allocation9 + $0x24] sm:$0xf]
      %v143 = vld [vmem:[#allocation9 + $0x28] sm:$0xf]
      %v144 = vld [vmem:[#allocation9 + $0x2c] sm:$0xf]
      %v145 = vld [vmem:[#allocation9 + $0x30] sm:$0xf]
      %v146 = vld [vmem:[#allocation9 + $0x34] sm:$0xf]
      %v147 = vld [vmem:[#allocation9 + $0x38] sm:$0xf]
      %v148 = vld [vmem:[#allocation9 + $0x3c] sm:$0xf]
      %v149 = vld [vmem:[#allocation9 + $0x40] sm:$0xf]
      %v150 = vld [vmem:[#allocation9 + $0x44] sm:$0xf]
      %v151 = vld [vmem:[#allocation9 + $0x48] sm:$0xf]
      %v152 = vld [vmem:[#allocation9 + $0x4c] sm:$0xf]
      %v153 = vld [vmem:[#allocation9 + $0x50] sm:$0xf]
      %v154 = vld [vmem:[#allocation9 + $0x54] sm:$0xf]
      %v155 = vld [vmem:[#allocation9 + $0x58] sm:$0xf]
      %v156 = vld [vmem:[#allocation9 + $0x5c] sm:$0xf]
      %v157 = vld [vmem:[#allocation9 + $0x60] sm:$0xf]
      %v158 = vld [vmem:[#allocation9 + $0x64] sm:$0xf]
      %v159 = vld [vmem:[#allocation9 + $0x68] sm:$0xf]
      %v160 = vld [vmem:[#allocation9 + $0x6c] sm:$0xf]
      %v161 = vld [vmem:[#allocation9 + $0x70] sm:$0xf]
      %v162 = vld [vmem:[#allocation9 + $0x74] sm:$0xf]
      %v163 = vld [vmem:[#allocation9 + $0x78] sm:$0xf]
      %v164 = vld [vmem:[#allocation9 + $0x7c] sm:$0xf]
      %v165 = vld [vmem:[#allocation9 + $0x80] sm:$0xf]
      %v166 = vld [vmem:[#allocation9 + $0x84] sm:$0xf]
      %v167 = vld [vmem:[#allocation9 + $0x88] sm:$0xf]
      %v168 = vld [vmem:[#allocation9 + $0x8c] sm:$0xf]
      %v169 = vld [vmem:[#allocation9 + $0x90] sm:$0xf]
      %v170 = vld [vmem:[#allocation9 + $0x94] sm:$0xf]
      %v171 = vld [vmem:[#allocation9 + $0x98] sm:$0xf]
      %v172 = vld [vmem:[#allocation9 + $0x9c] sm:$0xf]
      %v173 = vld [vmem:[#allocation9 + $0xa0] sm:$0xf]
      %v174 = vld [vmem:[#allocation9 + $0xa4] sm:$0xf]
      %v175 = vld [vmem:[#allocation9 + $0xa8] sm:$0xf]
      %v176 = vld [vmem:[#allocation9 + $0xac] sm:$0xf]
      %v177 = vld [vmem:[#allocation9 + $0xb0] sm:$0xf]
      %v178 = vld [vmem:[#allocation9 + $0xb4] sm:$0xf]
      %v179 = vld [vmem:[#allocation9 + $0xb8] sm:$0xf]
      %v180 = vld [vmem:[#allocation9 + $0xbc] sm:$0xf]
      %v181 = vld [vmem:[#allocation9 + $0xc0] sm:$0xf]
      %v182 = vld [vmem:[#allocation9 + $0xc4] sm:$0xf]
      %v183 = vld [vmem:[#allocation9 + $0xc8] sm:$0xf]
      %v184 = vld [vmem:[#allocation9 + $0xcc] sm:$0xf]
      %v185 = vld [vmem:[#allocation9 + $0xd0] sm:$0xf]
      %v186 = vld [vmem:[#allocation9 + $0xd4] sm:$0xf]
      %v187 = vld [vmem:[#allocation9 + $0xd8] sm:$0xf]
      %v188 = vld [vmem:[#allocation9 + $0xdc] sm:$0xf]
      %v189 = vld [vmem:[#allocation9 + $0xe0] sm:$0xf]
      %v190 = vld [vmem:[#allocation9 + $0xe4] sm:$0xf]
      %v191 = vld [vmem:[#allocation9 + $0xe8] sm:$0xf]
      %v192 = vld [vmem:[#allocation9 + $0xec] sm:$0xf]
      %v193 = vld [vmem:[#allocation9 + $0xf0] sm:$0xf]
      %v194 = vld [vmem:[#allocation9 + $0xf4] sm:$0xf]
      %v195 = vld [vmem:[#allocation9 + $0xf8] sm:$0xf]
      %v196 = vld [vmem:[#allocation9 + $0xfc] sm:$0xf]
      %v229 = vunpack.c.l.b16 %v101
      %v230 = vunpack.c.h.b16 %v101
      %v231 = vunpack.c.l.b16 %v102
      %v232 = vunpack.c.h.b16 %v102
      %v233 = vunpack.c.l.b16 %v103
      %v234 = vunpack.c.h.b16 %v103
      %v235 = vunpack.c.l.b16 %v104
      %v236 = vunpack.c.h.b16 %v104
      %v237 = vunpack.c.l.b16 %v105
      %v238 = vunpack.c.h.b16 %v105
      %v239 = vunpack.c.l.b16 %v106
      %v240 = vunpack.c.h.b16 %v106
      %v241 = vunpack.c.l.b16 %v107
      %v242 = vunpack.c.h.b16 %v107
      %v243 = vunpack.c.l.b16 %v108
      %v244 = vunpack.c.h.b16 %v108
      %v245 = vunpack.c.l.b16 %v109
      %v246 = vunpack.c.h.b16 %v109
      %v247 = vunpack.c.l.b16 %v110
      %v248 = vunpack.c.h.b16 %v110
      %v249 = vunpack.c.l.b16 %v111
      %v250 = vunpack.c.h.b16 %v111
      %v251 = vunpack.c.l.b16 %v112
      %v252 = vunpack.c.h.b16 %v112
      %v253 = vunpack.c.l.b16 %v113
      %v254 = vunpack.c.h.b16 %v113
      %v255 = vunpack.c.l.b16 %v114
      %v256 = vunpack.c.h.b16 %v114
      %v257 = vunpack.c.l.b16 %v115
      %v258 = vunpack.c.h.b16 %v115
      %v259 = vunpack.c.l.b16 %v116
      %v260 = vunpack.c.h.b16 %v116
      %v261 = vunpack.c.l.b16 %v117
      %v262 = vunpack.c.h.b16 %v117
      %v263 = vunpack.c.l.b16 %v118
      %v264 = vunpack.c.h.b16 %v118
      %v265 = vunpack.c.l.b16 %v119
      %v266 = vunpack.c.h.b16 %v119
      %v267 = vunpack.c.l.b16 %v120
      %v268 = vunpack.c.h.b16 %v120
      %v269 = vunpack.c.l.b16 %v121
      %v270 = vunpack.c.h.b16 %v121
      %v271 = vunpack.c.l.b16 %v122
      %v272 = vunpack.c.h.b16 %v122
      %v273 = vunpack.c.l.b16 %v123
      %v274 = vunpack.c.h.b16 %v123
      %v275 = vunpack.c.l.b16 %v124
      %v276 = vunpack.c.h.b16 %v124
      %v277 = vunpack.c.l.b16 %v125
      %v278 = vunpack.c.h.b16 %v125
      %v279 = vunpack.c.l.b16 %v126
      %v280 = vunpack.c.h.b16 %v126
      %v281 = vunpack.c.l.b16 %v127
      %v282 = vunpack.c.h.b16 %v127
      %v283 = vunpack.c.l.b16 %v128
      %v284 = vunpack.c.h.b16 %v128
      %v285 = vunpack.c.l.b16 %v129
      %v286 = vunpack.c.h.b16 %v129
      %v287 = vunpack.c.l.b16 %v130
      %v288 = vunpack.c.h.b16 %v130
      %v289 = vunpack.c.l.b16 %v131
      %v290 = vunpack.c.h.b16 %v131
      %v291 = vunpack.c.l.b16 %v132
      %v292 = vunpack.c.h.b16 %v132
      %v293 = vpack.c.b16 %v233, %v229
      %v294 = vpack.c.b16 %v234, %v230
      %v295 = vpack.c.b16 %v235, %v231
      %v296 = vpack.c.b16 %v236, %v232
      %v297 = vpack.c.b16 %v241, %v237
      %v298 = vpack.c.b16 %v242, %v238
      %v299 = vpack.c.b16 %v243, %v239
      %v300 = vpack.c.b16 %v244, %v240
      %v301 = vpack.c.b16 %v249, %v245
      %v302 = vpack.c.b16 %v250, %v246
      %v303 = vpack.c.b16 %v251, %v247
      %v304 = vpack.c.b16 %v252, %v248
      %v305 = vpack.c.b16 %v257, %v253
      %v306 = vpack.c.b16 %v258, %v254
      %v307 = vpack.c.b16 %v259, %v255
      %v308 = vpack.c.b16 %v260, %v256
      %v309 = vpack.c.b16 %v265, %v261
      %v310 = vpack.c.b16 %v266, %v262
      %v311 = vpack.c.b16 %v267, %v263
      %v312 = vpack.c.b16 %v268, %v264
      %v313 = vpack.c.b16 %v273, %v269
      %v314 = vpack.c.b16 %v274, %v270
      %v315 = vpack.c.b16 %v275, %v271
      %v316 = vpack.c.b16 %v276, %v272
      %v317 = vpack.c.b16 %v281, %v277
      %v318 = vpack.c.b16 %v282, %v278
      %v319 = vpack.c.b16 %v283, %v279
      %v320 = vpack.c.b16 %v284, %v280
      %v321 = vpack.c.b16 %v289, %v285
      %v322 = vpack.c.b16 %v290, %v286
      %v323 = vpack.c.b16 %v291, %v287
      %v324 = vpack.c.b16 %v292, %v288
      %v421 = vunpack.c.l.b16 %v133
      %v422 = vunpack.c.l.b16 %v134
      %v423 = vunpack.c.l.b16 %v135
      %v424 = vunpack.c.l.b16 %v136
      %v425 = vunpack.c.l.b16 %v137
      %v426 = vunpack.c.l.b16 %v138
      %v427 = vunpack.c.l.b16 %v139
      %v428 = vunpack.c.l.b16 %v140
      %v429 = vunpack.c.l.b16 %v141
      %v430 = vunpack.c.l.b16 %v142
      %v431 = vunpack.c.l.b16 %v143
      %v432 = vunpack.c.l.b16 %v144
      %v433 = vunpack.c.l.b16 %v145
      %v434 = vunpack.c.l.b16 %v146
      %v435 = vunpack.c.l.b16 %v147
      %v436 = vunpack.c.l.b16 %v148
      %v437 = vunpack.c.l.b16 %v149
      %v438 = vunpack.c.l.b16 %v150
      %v439 = vunpack.c.l.b16 %v151
      %v440 = vunpack.c.l.b16 %v152
      %v441 = vunpack.c.l.b16 %v153
      %v442 = vunpack.c.l.b16 %v154
      %v443 = vunpack.c.l.b16 %v155
      %v444 = vunpack.c.l.b16 %v156
      %v445 = vunpack.c.l.b16 %v157
      %v446 = vunpack.c.l.b16 %v158
      %v447 = vunpack.c.l.b16 %v159
      %v448 = vunpack.c.l.b16 %v160
      %v449 = vunpack.c.l.b16 %v161
      %v450 = vunpack.c.l.b16 %v162
      %v451 = vunpack.c.l.b16 %v163
      %v452 = vunpack.c.l.b16 %v164
      %v453 = vunpack.c.l.b16 %v165
      %v454 = vunpack.c.l.b16 %v166
      %v455 = vunpack.c.l.b16 %v167
      %v456 = vunpack.c.l.b16 %v168
      %v457 = vunpack.c.l.b16 %v169
      %v458 = vunpack.c.l.b16 %v170
      %v459 = vunpack.c.l.b16 %v171
      %v460 = vunpack.c.l.b16 %v172
      %v461 = vunpack.c.l.b16 %v173
      %v462 = vunpack.c.l.b16 %v174
      %v463 = vunpack.c.l.b16 %v175
      %v464 = vunpack.c.l.b16 %v176
      %v465 = vunpack.c.l.b16 %v177
      %v466 = vunpack.c.l.b16 %v178
      %v467 = vunpack.c.l.b16 %v179
      %v468 = vunpack.c.l.b16 %v180
      %v469 = vunpack.c.l.b16 %v181
      %v470 = vunpack.c.l.b16 %v182
      %v471 = vunpack.c.l.b16 %v183
      %v472 = vunpack.c.l.b16 %v184
      %v473 = vunpack.c.l.b16 %v185
      %v474 = vunpack.c.l.b16 %v186
      %v475 = vunpack.c.l.b16 %v187
      %v476 = vunpack.c.l.b16 %v188
      %v477 = vunpack.c.l.b16 %v189
      %v478 = vunpack.c.l.b16 %v190
      %v479 = vunpack.c.l.b16 %v191
      %v480 = vunpack.c.l.b16 %v192
      %v481 = vunpack.c.l.b16 %v193
      %v482 = vunpack.c.l.b16 %v194
      %v483 = vunpack.c.l.b16 %v195
      %v484 = vunpack.c.l.b16 %v196
      %v485 = vpack.c.b16 %v422, %v421
      %v486 = vpack.c.b16 %v424, %v423
      %v487 = vpack.c.b16 %v426, %v425
      %v488 = vpack.c.b16 %v428, %v427
      %v489 = vpack.c.b16 %v430, %v429
      %v490 = vpack.c.b16 %v432, %v431
      %v491 = vpack.c.b16 %v434, %v433
      %v492 = vpack.c.b16 %v436, %v435
      %v493 = vpack.c.b16 %v438, %v437
      %v494 = vpack.c.b16 %v440, %v439
      %v495 = vpack.c.b16 %v442, %v441
      %v496 = vpack.c.b16 %v444, %v443
      %v497 = vpack.c.b16 %v446, %v445
      %v498 = vpack.c.b16 %v448, %v447
      %v499 = vpack.c.b16 %v450, %v449
      %v500 = vpack.c.b16 %v452, %v451
      %v501 = vpack.c.b16 %v454, %v453
      %v502 = vpack.c.b16 %v456, %v455
      %v503 = vpack.c.b16 %v458, %v457
      %v504 = vpack.c.b16 %v460, %v459
      %v505 = vpack.c.b16 %v462, %v461
      %v506 = vpack.c.b16 %v464, %v463
      %v507 = vpack.c.b16 %v466, %v465
      %v508 = vpack.c.b16 %v468, %v467
      %v509 = vpack.c.b16 %v470, %v469
      %v510 = vpack.c.b16 %v472, %v471
      %v511 = vpack.c.b16 %v474, %v473
      %v512 = vpack.c.b16 %v476, %v475
      %v513 = vpack.c.b16 %v478, %v477
      %v514 = vpack.c.b16 %v480, %v479
      %v515 = vpack.c.b16 %v482, %v481
      %v516 = vpack.c.b16 %v484, %v483
      %549 = vmatpush.bf16.msra.mxu0 %v492
      %550 = vmatpush.bf16.msra.mxu0 %v491
      %551 = vmatpush.bf16.msra.mxu0 %v490
      %552 = vmatpush.bf16.msra.mxu0 %v489
      %553 = vmatpush.bf16.msra.mxu0 %v488
      %554 = vmatpush.bf16.msra.mxu0 %v487
      %555 = vmatpush.bf16.msra.mxu0 %v486
      %556 = vmatpush.bf16.msra.mxu0 %v485
      %557 = vmatmul.bf16.gmra.mxu0 %v293
      %v558 = vpop.f32.mrf.mxu0
      %v559 = vadd.f32 0.0, %v558
      %v560 = vpop.f32.mrf.mxu0
      %v561 = vadd.f32 0.0, %v560
      %562 = vmatmul.bf16.gmra.mxu0 %v297
      %v563 = vpop.f32.mrf.mxu0
      %v564 = vadd.f32 0.0, %v563
      %v565 = vpop.f32.mrf.mxu0
      %v566 = vadd.f32 0.0, %v565
      %567 = vmatmul.bf16.gmra.mxu0 %v301
      %v568 = vpop.f32.mrf.mxu0
      %v569 = vadd.f32 0.0, %v568
      %v570 = vpop.f32.mrf.mxu0
      %v571 = vadd.f32 0.0, %v570
      %572 = vmatmul.bf16.gmra.mxu0 %v305
      %v573 = vpop.f32.mrf.mxu0
      %v574 = vadd.f32 0.0, %v573
      %v575 = vpop.f32.mrf.mxu0
      %v576 = vadd.f32 0.0, %v575
      %577 = vmatmul.bf16.gmra.mxu0 %v309
      %v578 = vpop.f32.mrf.mxu0
      %v579 = vadd.f32 0.0, %v578
      %v580 = vpop.f32.mrf.mxu0
      %v581 = vadd.f32 0.0, %v580
      %582 = vmatmul.bf16.gmra.mxu0 %v313
      %v583 = vpop.f32.mrf.mxu0
      %v584 = vadd.f32 0.0, %v583
      %v585 = vpop.f32.mrf.mxu0
      %v586 = vadd.f32 0.0, %v585
      %587 = vmatmul.bf16.gmra.mxu0 %v317
      %v588 = vpop.f32.mrf.mxu0
      %v589 = vadd.f32 0.0, %v588
      %v590 = vpop.f32.mrf.mxu0
      %v591 = vadd.f32 0.0, %v590
      %592 = vmatmul.bf16.gmra.mxu0 %v321
      %v593 = vpop.f32.mrf.mxu0
      %v594 = vadd.f32 0.0, %v593
      %v595 = vpop.f32.mrf.mxu0
      %v596 = vadd.f32 0.0, %v595
      %597 = vdwg.mxu0
      %598 = vmatpush.bf16.msra.mxu0 %v500
      %599 = vmatpush.bf16.msra.mxu0 %v499
      %600 = vmatpush.bf16.msra.mxu0 %v498
      %601 = vmatpush.bf16.msra.mxu0 %v497
      %602 = vmatpush.bf16.msra.mxu0 %v496
      %603 = vmatpush.bf16.msra.mxu0 %v495
      %604 = vmatpush.bf16.msra.mxu0 %v494
      %605 = vmatpush.bf16.msra.mxu0 %v493
      %606 = vmatmul.bf16.gmra.mxu0 %v294
      %v607 = vpop.f32.mrf.mxu0
      %v608 = vadd.f32 %v559, %v607
      %v609 = vpop.f32.mrf.mxu0
      %v610 = vadd.f32 %v561, %v609
      %611 = vmatmul.bf16.gmra.mxu0 %v298
      %v612 = vpop.f32.mrf.mxu0
      %v613 = vadd.f32 %v564, %v612
      %v614 = vpop.f32.mrf.mxu0
      %v615 = vadd.f32 %v566, %v614
      %616 = vmatmul.bf16.gmra.mxu0 %v302
      %v617 = vpop.f32.mrf.mxu0
      %v618 = vadd.f32 %v569, %v617
      %v619 = vpop.f32.mrf.mxu0
      %v620 = vadd.f32 %v571, %v619
      %621 = vmatmul.bf16.gmra.mxu0 %v306
      %v622 = vpop.f32.mrf.mxu0
      %v623 = vadd.f32 %v574, %v622
      %v624 = vpop.f32.mrf.mxu0
      %v625 = vadd.f32 %v576, %v624
      %626 = vmatmul.bf16.gmra.mxu0 %v310
      %v627 = vpop.f32.mrf.mxu0
      %v628 = vadd.f32 %v579, %v627
      %v629 = vpop.f32.mrf.mxu0
      %v630 = vadd.f32 %v581, %v629
      %631 = vmatmul.bf16.gmra.mxu0 %v314
      %v632 = vpop.f32.mrf.mxu0
      %v633 = vadd.f32 %v584, %v632
      %v634 = vpop.f32.mrf.mxu0
      %v635 = vadd.f32 %v586, %v634
      %636 = vmatmul.bf16.gmra.mxu0 %v318
      %v637 = vpop.f32.mrf.mxu0
      %v638 = vadd.f32 %v589, %v637
      %v639 = vpop.f32.mrf.mxu0
      %v640 = vadd.f32 %v591, %v639
      %641 = vmatmul.bf16.gmra.mxu0 %v322
      %v642 = vpop.f32.mrf.mxu0
      %v643 = vadd.f32 %v594, %v642
      %v644 = vpop.f32.mrf.mxu0
      %v645 = vadd.f32 %v596, %v644
      %646 = vdwg.mxu0
      %647 = vmatpush.bf16.msra.mxu0 %v508
      %648 = vmatpush.bf16.msra.mxu0 %v507
      %649 = vmatpush.bf16.msra.mxu0 %v506
      %650 = vmatpush.bf16.msra.mxu0 %v505
      %651 = vmatpush.bf16.msra.mxu0 %v504
      %652 = vmatpush.bf16.msra.mxu0 %v503
      %653 = vmatpush.bf16.msra.mxu0 %v502
      %654 = vmatpush.bf16.msra.mxu0 %v501
      %655 = vmatmul.bf16.gmra.mxu0 %v295
      %v656 = vpop.f32.mrf.mxu0
      %v657 = vadd.f32 %v608, %v656
      %v658 = vpop.f32.mrf.mxu0
      %v659 = vadd.f32 %v610, %v658
      %660 = vmatmul.bf16.gmra.mxu0 %v299
      %v661 = vpop.f32.mrf.mxu0
      %v662 = vadd.f32 %v613, %v661
      %v663 = vpop.f32.mrf.mxu0
      %v664 = vadd.f32 %v615, %v663
      %665 = vmatmul.bf16.gmra.mxu0 %v303
      %v666 = vpop.f32.mrf.mxu0
      %v667 = vadd.f32 %v618, %v666
      %v668 = vpop.f32.mrf.mxu0
      %v669 = vadd.f32 %v620, %v668
      %670 = vmatmul.bf16.gmra.mxu0 %v307
      %v671 = vpop.f32.mrf.mxu0
      %v672 = vadd.f32 %v623, %v671
      %v673 = vpop.f32.mrf.mxu0
      %v674 = vadd.f32 %v625, %v673
      %675 = vmatmul.bf16.gmra.mxu0 %v311
      %v676 = vpop.f32.mrf.mxu0
      %v677 = vadd.f32 %v628, %v676
      %v678 = vpop.f32.mrf.mxu0
      %v679 = vadd.f32 %v630, %v678
      %680 = vmatmul.bf16.gmra.mxu0 %v315
      %v681 = vpop.f32.mrf.mxu0
      %v682 = vadd.f32 %v633, %v681
      %v683 = vpop.f32.mrf.mxu0
      %v684 = vadd.f32 %v635, %v683
      %685 = vmatmul.bf16.gmra.mxu0 %v319
      %v686 = vpop.f32.mrf.mxu0
      %v687 = vadd.f32 %v638, %v686
      %v688 = vpop.f32.mrf.mxu0
      %v689 = vadd.f32 %v640, %v688
      %690 = vmatmul.bf16.gmra.mxu0 %v323
      %v691 = vpop.f32.mrf.mxu0
      %v692 = vadd.f32 %v643, %v691
      %v693 = vpop.f32.mrf.mxu0
      %v694 = vadd.f32 %v645, %v693
      %695 = vdwg.mxu0
      %696 = vmatpush.bf16.msra.mxu0 %v516
      %697 = vmatpush.bf16.msra.mxu0 %v515
      %698 = vmatpush.bf16.msra.mxu0 %v514
      %699 = vmatpush.bf16.msra.mxu0 %v513
      %700 = vmatpush.bf16.msra.mxu0 %v512
      %701 = vmatpush.bf16.msra.mxu0 %v511
      %702 = vmatpush.bf16.msra.mxu0 %v510
      %703 = vmatpush.bf16.msra.mxu0 %v509
      %704 = vmatmul.bf16.gmra.mxu0 %v296
      %v705 = vpop.f32.mrf.mxu0
      %v706 = vadd.f32 %v657, %v705
      %v707 = vpop.f32.mrf.mxu0
      %v708 = vadd.f32 %v659, %v707
      %709 = vmatmul.bf16.gmra.mxu0 %v300
      %v710 = vpop.f32.mrf.mxu0
      %v711 = vadd.f32 %v662, %v710
      %v712 = vpop.f32.mrf.mxu0
      %v713 = vadd.f32 %v664, %v712
      %714 = vmatmul.bf16.gmra.mxu0 %v304
      %v715 = vpop.f32.mrf.mxu0
      %v716 = vadd.f32 %v667, %v715
      %v717 = vpop.f32.mrf.mxu0
      %v718 = vadd.f32 %v669, %v717
      %719 = vmatmul.bf16.gmra.mxu0 %v308
      %v720 = vpop.f32.mrf.mxu0
      %v721 = vadd.f32 %v672, %v720
      %v722 = vpop.f32.mrf.mxu0
      %v723 = vadd.f32 %v674, %v722
      %724 = vmatmul.bf16.gmra.mxu0 %v312
      %v725 = vpop.f32.mrf.mxu0
      %v726 = vadd.f32 %v677, %v725
      %v727 = vpop.f32.mrf.mxu0
      %v728 = vadd.f32 %v679, %v727
      %729 = vmatmul.bf16.gmra.mxu0 %v316
      %v730 = vpop.f32.mrf.mxu0
      %v731 = vadd.f32 %v682, %v730
      %v732 = vpop.f32.mrf.mxu0
      %v733 = vadd.f32 %v684, %v732
      %734 = vmatmul.bf16.gmra.mxu0 %v320
      %v735 = vpop.f32.mrf.mxu0
      %v736 = vadd.f32 %v687, %v735
      %v737 = vpop.f32.mrf.mxu0
      %v738 = vadd.f32 %v689, %v737
      %739 = vmatmul.bf16.gmra.mxu0 %v324
      %v740 = vpop.f32.mrf.mxu0
      %v741 = vadd.f32 %v692, %v740
      %v742 = vpop.f32.mrf.mxu0
      %v743 = vadd.f32 %v694, %v742
      %744 = vdwg.mxu0
      %745 = vst [vmem:[#allocation11] sm:$0xff] %v706
      %746 = vst [vmem:[#allocation11 + $0x8] sm:$0xff] %v708
      %747 = vst [vmem:[#allocation11 + $0x10] sm:$0xff] %v711
      %748 = vst [vmem:[#allocation11 + $0x18] sm:$0xff] %v713
      %749 = vst [vmem:[#allocation11 + $0x20] sm:$0xff] %v716
      %750 = vst [vmem:[#allocation11 + $0x28] sm:$0xff] %v718
      %751 = vst [vmem:[#allocation11 + $0x30] sm:$0xff] %v721
      %752 = vst [vmem:[#allocation11 + $0x38] sm:$0xff] %v723
      %753 = vst [vmem:[#allocation11 + $0x40] sm:$0xff] %v726
      %754 = vst [vmem:[#allocation11 + $0x48] sm:$0xff] %v728
      %755 = vst [vmem:[#allocation11 + $0x50] sm:$0xff] %v731
      %756 = vst [vmem:[#allocation11 + $0x58] sm:$0xff] %v733
      %757 = vst [vmem:[#allocation11 + $0x60] sm:$0xff] %v736
      %758 = vst [vmem:[#allocation11 + $0x68] sm:$0xff] %v738
      %759 = vst [vmem:[#allocation11 + $0x70] sm:$0xff] %v741
      %760 = vst [vmem:[#allocation11 + $0x78] sm:$0xff] %v743
    $region25: #{tpu_custom_call.1} parent=1 // pred_fallthru
      _
    %p761 = scmp.ne.s32.totalorder 0, 0
    %p762 = pnand %p761, %p74
    %p763 = pneg %p762
    // Predicated region
    $region26: #{tpu_custom_call.1} parent=1 // pred_check
      _
    $region27: #{tpu_custom_call.1} parent=1 // pred_check_branch
      %765 = sbr.rel (%p762) target = $region29
    $region28: #{tpu_custom_call.1} parent=1 // pred_region
      %v766 = vld [vmem:[#allocation11] sm:$0xff]
      %v767 = vld [vmem:[#allocation11 + $0x8] sm:$0xff]
      %v768 = vld [vmem:[#allocation11 + $0x10] sm:$0xff]
      %v769 = vld [vmem:[#allocation11 + $0x18] sm:$0xff]
      %v770 = vld [vmem:[#allocation11 + $0x20] sm:$0xff]
      %v771 = vld [vmem:[#allocation11 + $0x28] sm:$0xff]
      %v772 = vld [vmem:[#allocation11 + $0x30] sm:$0xff]
      %v773 = vld [vmem:[#allocation11 + $0x38] sm:$0xff]
      %v774 = vld [vmem:[#allocation11 + $0x40] sm:$0xff]
      %v775 = vld [vmem:[#allocation11 + $0x48] sm:$0xff]
      %v776 = vld [vmem:[#allocation11 + $0x50] sm:$0xff]
      %v777 = vld [vmem:[#allocation11 + $0x58] sm:$0xff]
      %v778 = vld [vmem:[#allocation11 + $0x60] sm:$0xff]
      %v779 = vld [vmem:[#allocation11 + $0x68] sm:$0xff]
      %v780 = vld [vmem:[#allocation11 + $0x70] sm:$0xff]
      %v781 = vld [vmem:[#allocation11 + $0x78] sm:$0xff]
      %v782 = vld [vmem:[#allocation6] sm:$0xff]
      %v783 = vld [vmem:[#allocation6 + $0x8] sm:$0xff]
      %v784 = vld [vmem:[#allocation6 + $0x10] sm:$0xff]
      %v785 = vld [vmem:[#allocation6 + $0x18] sm:$0xff]
      %v786 = vld [vmem:[#allocation6 + $0x20] sm:$0xff]
      %v787 = vld [vmem:[#allocation6 + $0x28] sm:$0xff]
      %v788 = vld [vmem:[#allocation6 + $0x30] sm:$0xff]
      %v789 = vld [vmem:[#allocation6 + $0x38] sm:$0xff]
      %v790 = vld [vmem:[#allocation6 + $0x40] sm:$0xff]
      %v791 = vld [vmem:[#allocation6 + $0x48] sm:$0xff]
      %v792 = vld [vmem:[#allocation6 + $0x50] sm:$0xff]
      %v793 = vld [vmem:[#allocation6 + $0x58] sm:$0xff]
      %v794 = vld [vmem:[#allocation6 + $0x60] sm:$0xff]
      %v795 = vld [vmem:[#allocation6 + $0x68] sm:$0xff]
      %v796 = vld [vmem:[#allocation6 + $0x70] sm:$0xff]
      %v797 = vld [vmem:[#allocation6 + $0x78] sm:$0xff]
      %v798 = vld [vmem:[#allocation6 + $0x80] sm:$0xff]
      %v799 = vld [vmem:[#allocation6 + $0x88] sm:$0xff]
      %v800 = vld [vmem:[#allocation6 + $0x90] sm:$0xff]
      %v801 = vld [vmem:[#allocation6 + $0x98] sm:$0xff]
      %v802 = vld [vmem:[#allocation6 + $0xa0] sm:$0xff]
      %v803 = vld [vmem:[#allocation6 + $0xa8] sm:$0xff]
      %v804 = vld [vmem:[#allocation6 + $0xb0] sm:$0xff]
      %v805 = vld [vmem:[#allocation6 + $0xb8] sm:$0xff]
      %v806 = vld [vmem:[#allocation6 + $0xc0] sm:$0xff]
      %v807 = vld [vmem:[#allocation6 + $0xc8] sm:$0xff]
      %v808 = vld [vmem:[#allocation6 + $0xd0] sm:$0xff]
      %v809 = vld [vmem:[#allocation6 + $0xd8] sm:$0xff]
      %v810 = vld [vmem:[#allocation6 + $0xe0] sm:$0xff]
      %v811 = vld [vmem:[#allocation6 + $0xe8] sm:$0xff]
      %v812 = vld [vmem:[#allocation6 + $0xf0] sm:$0xff]
      %v813 = vld [vmem:[#allocation6 + $0xf8] sm:$0xff]
      %v814 = vld [vmem:[#allocation9] sm:$0xf]
      %v815 = vld [vmem:[#allocation9 + $0x4] sm:$0xf]
      %v816 = vld [vmem:[#allocation9 + $0x8] sm:$0xf]
      %v817 = vld [vmem:[#allocation9 + $0xc] sm:$0xf]
      %v818 = vld [vmem:[#allocation9 + $0x10] sm:$0xf]
      %v819 = vld [vmem:[#allocation9 + $0x14] sm:$0xf]
      %v820 = vld [vmem:[#allocation9 + $0x18] sm:$0xf]
      %v821 = vld [vmem:[#allocation9 + $0x1c] sm:$0xf]
      %v822 = vld [vmem:[#allocation9 + $0x20] sm:$0xf]
      %v823 = vld [vmem:[#allocation9 + $0x24] sm:$0xf]
      %v824 = vld [vmem:[#allocation9 + $0x28] sm:$0xf]
      %v825 = vld [vmem:[#allocation9 + $0x2c] sm:$0xf]
      %v826 = vld [vmem:[#allocation9 + $0x30] sm:$0xf]
      %v827 = vld [vmem:[#allocation9 + $0x34] sm:$0xf]
      %v828 = vld [vmem:[#allocation9 + $0x38] sm:$0xf]
      %v829 = vld [vmem:[#allocation9 + $0x3c] sm:$0xf]
      %v830 = vld [vmem:[#allocation9 + $0x40] sm:$0xf]
      %v831 = vld [vmem:[#allocation9 + $0x44] sm:$0xf]
      %v832 = vld [vmem:[#allocation9 + $0x48] sm:$0xf]
      %v833 = vld [vmem:[#allocation9 + $0x4c] sm:$0xf]
      %v834 = vld [vmem:[#allocation9 + $0x50] sm:$0xf]
      %v835 = vld [vmem:[#allocation9 + $0x54] sm:$0xf]
      %v836 = vld [vmem:[#allocation9 + $0x58] sm:$0xf]
      %v837 = vld [vmem:[#allocation9 + $0x5c] sm:$0xf]
      %v838 = vld [vmem:[#allocation9 + $0x60] sm:$0xf]
      %v839 = vld [vmem:[#allocation9 + $0x64] sm:$0xf]
      %v840 = vld [vmem:[#allocation9 + $0x68] sm:$0xf]
      %v841 = vld [vmem:[#allocation9 + $0x6c] sm:$0xf]
      %v842 = vld [vmem:[#allocation9 + $0x70] sm:$0xf]
      %v843 = vld [vmem:[#allocation9 + $0x74] sm:$0xf]
      %v844 = vld [vmem:[#allocation9 + $0x78] sm:$0xf]
      %v845 = vld [vmem:[#allocation9 + $0x7c] sm:$0xf]
      %v846 = vld [vmem:[#allocation9 + $0x80] sm:$0xf]
      %v847 = vld [vmem:[#allocation9 + $0x84] sm:$0xf]
      %v848 = vld [vmem:[#allocation9 + $0x88] sm:$0xf]
      %v849 = vld [vmem:[#allocation9 + $0x8c] sm:$0xf]
      %v850 = vld [vmem:[#allocation9 + $0x90] sm:$0xf]
      %v851 = vld [vmem:[#allocation9 + $0x94] sm:$0xf]
      %v852 = vld [vmem:[#allocation9 + $0x98] sm:$0xf]
      %v853 = vld [vmem:[#allocation9 + $0x9c] sm:$0xf]
      %v854 = vld [vmem:[#allocation9 + $0xa0] sm:$0xf]
      %v855 = vld [vmem:[#allocation9 + $0xa4] sm:$0xf]
      %v856 = vld [vmem:[#allocation9 + $0xa8] sm:$0xf]
      %v857 = vld [vmem:[#allocation9 + $0xac] sm:$0xf]
      %v858 = vld [vmem:[#allocation9 + $0xb0] sm:$0xf]
      %v859 = vld [vmem:[#allocation9 + $0xb4] sm:$0xf]
      %v860 = vld [vmem:[#allocation9 + $0xb8] sm:$0xf]
      %v861 = vld [vmem:[#allocation9 + $0xbc] sm:$0xf]
      %v862 = vld [vmem:[#allocation9 + $0xc0] sm:$0xf]
      %v863 = vld [vmem:[#allocation9 + $0xc4] sm:$0xf]
      %v864 = vld [vmem:[#allocation9 + $0xc8] sm:$0xf]
      %v865 = vld [vmem:[#allocation9 + $0xcc] sm:$0xf]
      %v866 = vld [vmem:[#allocation9 + $0xd0] sm:$0xf]
      %v867 = vld [vmem:[#allocation9 + $0xd4] sm:$0xf]
      %v868 = vld [vmem:[#allocation9 + $0xd8] sm:$0xf]
      %v869 = vld [vmem:[#allocation9 + $0xdc] sm:$0xf]
      %v870 = vld [vmem:[#allocation9 + $0xe0] sm:$0xf]
      %v871 = vld [vmem:[#allocation9 + $0xe4] sm:$0xf]
      %v872 = vld [vmem:[#allocation9 + $0xe8] sm:$0xf]
      %v873 = vld [vmem:[#allocation9 + $0xec] sm:$0xf]
      %v874 = vld [vmem:[#allocation9 + $0xf0] sm:$0xf]
      %v875 = vld [vmem:[#allocation9 + $0xf4] sm:$0xf]
      %v876 = vld [vmem:[#allocation9 + $0xf8] sm:$0xf]
      %v877 = vld [vmem:[#allocation9 + $0xfc] sm:$0xf]
      %v910 = vunpack.c.l.b16 %v782
      %v911 = vunpack.c.h.b16 %v782
      %v912 = vunpack.c.l.b16 %v783
      %v913 = vunpack.c.h.b16 %v783
      %v914 = vunpack.c.l.b16 %v784
      %v915 = vunpack.c.h.b16 %v784
      %v916 = vunpack.c.l.b16 %v785
      %v917 = vunpack.c.h.b16 %v785
      %v918 = vunpack.c.l.b16 %v786
      %v919 = vunpack.c.h.b16 %v786
      %v920 = vunpack.c.l.b16 %v787
      %v921 = vunpack.c.h.b16 %v787
      %v922 = vunpack.c.l.b16 %v788
      %v923 = vunpack.c.h.b16 %v788
      %v924 = vunpack.c.l.b16 %v789
      %v925 = vunpack.c.h.b16 %v789
      %v926 = vunpack.c.l.b16 %v790
      %v927 = vunpack.c.h.b16 %v790
      %v928 = vunpack.c.l.b16 %v791
      %v929 = vunpack.c.h.b16 %v791
      %v930 = vunpack.c.l.b16 %v792
      %v931 = vunpack.c.h.b16 %v792
      %v932 = vunpack.c.l.b16 %v793
      %v933 = vunpack.c.h.b16 %v793
      %v934 = vunpack.c.l.b16 %v794
      %v935 = vunpack.c.h.b16 %v794
      %v936 = vunpack.c.l.b16 %v795
      %v937 = vunpack.c.h.b16 %v795
      %v938 = vunpack.c.l.b16 %v796
      %v939 = vunpack.c.h.b16 %v796
      %v940 = vunpack.c.l.b16 %v797
      %v941 = vunpack.c.h.b16 %v797
      %v942 = vunpack.c.l.b16 %v798
      %v943 = vunpack.c.h.b16 %v798
      %v944 = vunpack.c.l.b16 %v799
      %v945 = vunpack.c.h.b16 %v799
      %v946 = vunpack.c.l.b16 %v800
      %v947 = vunpack.c.h.b16 %v800
      %v948 = vunpack.c.l.b16 %v801
      %v949 = vunpack.c.h.b16 %v801
      %v950 = vunpack.c.l.b16 %v802
      %v951 = vunpack.c.h.b16 %v802
      %v952 = vunpack.c.l.b16 %v803
      %v953 = vunpack.c.h.b16 %v803
      %v954 = vunpack.c.l.b16 %v804
      %v955 = vunpack.c.h.b16 %v804
      %v956 = vunpack.c.l.b16 %v805
      %v957 = vunpack.c.h.b16 %v805
      %v958 = vunpack.c.l.b16 %v806
      %v959 = vunpack.c.h.b16 %v806
      %v960 = vunpack.c.l.b16 %v807
      %v961 = vunpack.c.h.b16 %v807
      %v962 = vunpack.c.l.b16 %v808
      %v963 = vunpack.c.h.b16 %v808
      %v964 = vunpack.c.l.b16 %v809
      %v965 = vunpack.c.h.b16 %v809
      %v966 = vunpack.c.l.b16 %v810
      %v967 = vunpack.c.h.b16 %v810
      %v968 = vunpack.c.l.b16 %v811
      %v969 = vunpack.c.h.b16 %v811
      %v970 = vunpack.c.l.b16 %v812
      %v971 = vunpack.c.h.b16 %v812
      %v972 = vunpack.c.l.b16 %v813
      %v973 = vunpack.c.h.b16 %v813
      %v974 = vpack.c.b16 %v914, %v910
      %v975 = vpack.c.b16 %v915, %v911
      %v976 = vpack.c.b16 %v916, %v912
      %v977 = vpack.c.b16 %v917, %v913
      %v978 = vpack.c.b16 %v922, %v918
      %v979 = vpack.c.b16 %v923, %v919
      %v980 = vpack.c.b16 %v924, %v920
      %v981 = vpack.c.b16 %v925, %v921
      %v982 = vpack.c.b16 %v930, %v926
      %v983 = vpack.c.b16 %v931, %v927
      %v984 = vpack.c.b16 %v932, %v928
      %v985 = vpack.c.b16 %v933, %v929
      %v986 = vpack.c.b16 %v938, %v934
      %v987 = vpack.c.b16 %v939, %v935
      %v988 = vpack.c.b16 %v940, %v936
      %v989 = vpack.c.b16 %v941, %v937
      %v990 = vpack.c.b16 %v946, %v942
      %v991 = vpack.c.b16 %v947, %v943
      %v992 = vpack.c.b16 %v948, %v944
      %v993 = vpack.c.b16 %v949, %v945
      %v994 = vpack.c.b16 %v954, %v950
      %v995 = vpack.c.b16 %v955, %v951
      %v996 = vpack.c.b16 %v956, %v952
      %v997 = vpack.c.b16 %v957, %v953
      %v998 = vpack.c.b16 %v962, %v958
      %v999 = vpack.c.b16 %v963, %v959
      %v1000 = vpack.c.b16 %v964, %v960
      %v1001 = vpack.c.b16 %v965, %v961
      %v1002 = vpack.c.b16 %v970, %v966
      %v1003 = vpack.c.b16 %v971, %v967
      %v1004 = vpack.c.b16 %v972, %v968
      %v1005 = vpack.c.b16 %v973, %v969
      %v1102 = vunpack.c.l.b16 %v814
      %v1103 = vunpack.c.l.b16 %v815
      %v1104 = vunpack.c.l.b16 %v816
      %v1105 = vunpack.c.l.b16 %v817
      %v1106 = vunpack.c.l.b16 %v818
      %v1107 = vunpack.c.l.b16 %v819
      %v1108 = vunpack.c.l.b16 %v820
      %v1109 = vunpack.c.l.b16 %v821
      %v1110 = vunpack.c.l.b16 %v822
      %v1111 = vunpack.c.l.b16 %v823
      %v1112 = vunpack.c.l.b16 %v824
      %v1113 = vunpack.c.l.b16 %v825
      %v1114 = vunpack.c.l.b16 %v826
      %v1115 = vunpack.c.l.b16 %v827
      %v1116 = vunpack.c.l.b16 %v828
      %v1117 = vunpack.c.l.b16 %v829
      %v1118 = vunpack.c.l.b16 %v830
      %v1119 = vunpack.c.l.b16 %v831
      %v1120 = vunpack.c.l.b16 %v832
      %v1121 = vunpack.c.l.b16 %v833
      %v1122 = vunpack.c.l.b16 %v834
      %v1123 = vunpack.c.l.b16 %v835
      %v1124 = vunpack.c.l.b16 %v836
      %v1125 = vunpack.c.l.b16 %v837
      %v1126 = vunpack.c.l.b16 %v838
      %v1127 = vunpack.c.l.b16 %v839
      %v1128 = vunpack.c.l.b16 %v840
      %v1129 = vunpack.c.l.b16 %v841
      %v1130 = vunpack.c.l.b16 %v842
      %v1131 = vunpack.c.l.b16 %v843
      %v1132 = vunpack.c.l.b16 %v844
      %v1133 = vunpack.c.l.b16 %v845
      %v1134 = vunpack.c.l.b16 %v846
      %v1135 = vunpack.c.l.b16 %v847
      %v1136 = vunpack.c.l.b16 %v848
      %v1137 = vunpack.c.l.b16 %v849
      %v1138 = vunpack.c.l.b16 %v850
      %v1139 = vunpack.c.l.b16 %v851
      %v1140 = vunpack.c.l.b16 %v852
      %v1141 = vunpack.c.l.b16 %v853
      %v1142 = vunpack.c.l.b16 %v854
      %v1143 = vunpack.c.l.b16 %v855
      %v1144 = vunpack.c.l.b16 %v856
      %v1145 = vunpack.c.l.b16 %v857
      %v1146 = vunpack.c.l.b16 %v858
      %v1147 = vunpack.c.l.b16 %v859
      %v1148 = vunpack.c.l.b16 %v860
      %v1149 = vunpack.c.l.b16 %v861
      %v1150 = vunpack.c.l.b16 %v862
      %v1151 = vunpack.c.l.b16 %v863
      %v1152 = vunpack.c.l.b16 %v864
      %v1153 = vunpack.c.l.b16 %v865
      %v1154 = vunpack.c.l.b16 %v866
      %v1155 = vunpack.c.l.b16 %v867
      %v1156 = vunpack.c.l.b16 %v868
      %v1157 = vunpack.c.l.b16 %v869
      %v1158 = vunpack.c.l.b16 %v870
      %v1159 = vunpack.c.l.b16 %v871
      %v1160 = vunpack.c.l.b16 %v872
      %v1161 = vunpack.c.l.b16 %v873
      %v1162 = vunpack.c.l.b16 %v874
      %v1163 = vunpack.c.l.b16 %v875
      %v1164 = vunpack.c.l.b16 %v876
      %v1165 = vunpack.c.l.b16 %v877
      %v1166 = vpack.c.b16 %v1103, %v1102
      %v1167 = vpack.c.b16 %v1105, %v1104
      %v1168 = vpack.c.b16 %v1107, %v1106
      %v1169 = vpack.c.b16 %v1109, %v1108
      %v1170 = vpack.c.b16 %v1111, %v1110
      %v1171 = vpack.c.b16 %v1113, %v1112
      %v1172 = vpack.c.b16 %v1115, %v1114
      %v1173 = vpack.c.b16 %v1117, %v1116
      %v1174 = vpack.c.b16 %v1119, %v1118
      %v1175 = vpack.c.b16 %v1121, %v1120
      %v1176 = vpack.c.b16 %v1123, %v1122
      %v1177 = vpack.c.b16 %v1125, %v1124
      %v1178 = vpack.c.b16 %v1127, %v1126
      %v1179 = vpack.c.b16 %v1129, %v1128
      %v1180 = vpack.c.b16 %v1131, %v1130
      %v1181 = vpack.c.b16 %v1133, %v1132
      %v1182 = vpack.c.b16 %v1135, %v1134
      %v1183 = vpack.c.b16 %v1137, %v1136
      %v1184 = vpack.c.b16 %v1139, %v1138
      %v1185 = vpack.c.b16 %v1141, %v1140
      %v1186 = vpack.c.b16 %v1143, %v1142
      %v1187 = vpack.c.b16 %v1145, %v1144
      %v1188 = vpack.c.b16 %v1147, %v1146
      %v1189 = vpack.c.b16 %v1149, %v1148
      %v1190 = vpack.c.b16 %v1151, %v1150
      %v1191 = vpack.c.b16 %v1153, %v1152
      %v1192 = vpack.c.b16 %v1155, %v1154
      %v1193 = vpack.c.b16 %v1157, %v1156
      %v1194 = vpack.c.b16 %v1159, %v1158
      %v1195 = vpack.c.b16 %v1161, %v1160
      %v1196 = vpack.c.b16 %v1163, %v1162
      %v1197 = vpack.c.b16 %v1165, %v1164
      %1230 = vmatpush.bf16.msra.mxu0 %v1173
      %1231 = vmatpush.bf16.msra.mxu0 %v1172
      %1232 = vmatpush.bf16.msra.mxu0 %v1171
      %1233 = vmatpush.bf16.msra.mxu0 %v1170
      %1234 = vmatpush.bf16.msra.mxu0 %v1169
      %1235 = vmatpush.bf16.msra.mxu0 %v1168
      %1236 = vmatpush.bf16.msra.mxu0 %v1167
      %1237 = vmatpush.bf16.msra.mxu0 %v1166
      %1238 = vmatmul.bf16.gmra.mxu0 %v974
      %v1239 = vpop.f32.mrf.mxu0
      %v1240 = vadd.f32 0.0, %v1239
      %v1241 = vpop.f32.mrf.mxu0
      %v1242 = vadd.f32 0.0, %v1241
      %1243 = vmatmul.bf16.gmra.mxu0 %v978
      %v1244 = vpop.f32.mrf.mxu0
      %v1245 = vadd.f32 0.0, %v1244
      %v1246 = vpop.f32.mrf.mxu0
      %v1247 = vadd.f32 0.0, %v1246
      %1248 = vmatmul.bf16.gmra.mxu0 %v982
      %v1249 = vpop.f32.mrf.mxu0
      %v1250 = vadd.f32 0.0, %v1249
      %v1251 = vpop.f32.mrf.mxu0
      %v1252 = vadd.f32 0.0, %v1251
      %1253 = vmatmul.bf16.gmra.mxu0 %v986
      %v1254 = vpop.f32.mrf.mxu0
      %v1255 = vadd.f32 0.0, %v1254
      %v1256 = vpop.f32.mrf.mxu0
      %v1257 = vadd.f32 0.0, %v1256
      %1258 = vmatmul.bf16.gmra.mxu0 %v990
      %v1259 = vpop.f32.mrf.mxu0
      %v1260 = vadd.f32 0.0, %v1259
      %v1261 = vpop.f32.mrf.mxu0
      %v1262 = vadd.f32 0.0, %v1261
      %1263 = vmatmul.bf16.gmra.mxu0 %v994
      %v1264 = vpop.f32.mrf.mxu0
      %v1265 = vadd.f32 0.0, %v1264
      %v1266 = vpop.f32.mrf.mxu0
      %v1267 = vadd.f32 0.0, %v1266
      %1268 = vmatmul.bf16.gmra.mxu0 %v998
      %v1269 = vpop.f32.mrf.mxu0
      %v1270 = vadd.f32 0.0, %v1269
      %v1271 = vpop.f32.mrf.mxu0
      %v1272 = vadd.f32 0.0, %v1271
      %1273 = vmatmul.bf16.gmra.mxu0 %v1002
      %v1274 = vpop.f32.mrf.mxu0
      %v1275 = vadd.f32 0.0, %v1274
      %v1276 = vpop.f32.mrf.mxu0
      %v1277 = vadd.f32 0.0, %v1276
      %1278 = vdwg.mxu0
      %1279 = vmatpush.bf16.msra.mxu0 %v1181
      %1280 = vmatpush.bf16.msra.mxu0 %v1180
      %1281 = vmatpush.bf16.msra.mxu0 %v1179
      %1282 = vmatpush.bf16.msra.mxu0 %v1178
      %1283 = vmatpush.bf16.msra.mxu0 %v1177
      %1284 = vmatpush.bf16.msra.mxu0 %v1176
      %1285 = vmatpush.bf16.msra.mxu0 %v1175
      %1286 = vmatpush.bf16.msra.mxu0 %v1174
      %1287 = vmatmul.bf16.gmra.mxu0 %v975
      %v1288 = vpop.f32.mrf.mxu0
      %v1289 = vadd.f32 %v1240, %v1288
      %v1290 = vpop.f32.mrf.mxu0
      %v1291 = vadd.f32 %v1242, %v1290
      %1292 = vmatmul.bf16.gmra.mxu0 %v979
      %v1293 = vpop.f32.mrf.mxu0
      %v1294 = vadd.f32 %v1245, %v1293
      %v1295 = vpop.f32.mrf.mxu0
      %v1296 = vadd.f32 %v1247, %v1295
      %1297 = vmatmul.bf16.gmra.mxu0 %v983
      %v1298 = vpop.f32.mrf.mxu0
      %v1299 = vadd.f32 %v1250, %v1298
      %v1300 = vpop.f32.mrf.mxu0
      %v1301 = vadd.f32 %v1252, %v1300
      %1302 = vmatmul.bf16.gmra.mxu0 %v987
      %v1303 = vpop.f32.mrf.mxu0
      %v1304 = vadd.f32 %v1255, %v1303
      %v1305 = vpop.f32.mrf.mxu0
      %v1306 = vadd.f32 %v1257, %v1305
      %1307 = vmatmul.bf16.gmra.mxu0 %v991
      %v1308 = vpop.f32.mrf.mxu0
      %v1309 = vadd.f32 %v1260, %v1308
      %v1310 = vpop.f32.mrf.mxu0
      %v1311 = vadd.f32 %v1262, %v1310
      %1312 = vmatmul.bf16.gmra.mxu0 %v995
      %v1313 = vpop.f32.mrf.mxu0
      %v1314 = vadd.f32 %v1265, %v1313
      %v1315 = vpop.f32.mrf.mxu0
      %v1316 = vadd.f32 %v1267, %v1315
      %1317 = vmatmul.bf16.gmra.mxu0 %v999
      %v1318 = vpop.f32.mrf.mxu0
      %v1319 = vadd.f32 %v1270, %v1318
      %v1320 = vpop.f32.mrf.mxu0
      %v1321 = vadd.f32 %v1272, %v1320
      %1322 = vmatmul.bf16.gmra.mxu0 %v1003
      %v1323 = vpop.f32.mrf.mxu0
      %v1324 = vadd.f32 %v1275, %v1323
      %v1325 = vpop.f32.mrf.mxu0
      %v1326 = vadd.f32 %v1277, %v1325
      %1327 = vdwg.mxu0
      %1328 = vmatpush.bf16.msra.mxu0 %v1189
      %1329 = vmatpush.bf16.msra.mxu0 %v1188
      %1330 = vmatpush.bf16.msra.mxu0 %v1187
      %1331 = vmatpush.bf16.msra.mxu0 %v1186
      %1332 = vmatpush.bf16.msra.mxu0 %v1185
      %1333 = vmatpush.bf16.msra.mxu0 %v1184
      %1334 = vmatpush.bf16.msra.mxu0 %v1183
      %1335 = vmatpush.bf16.msra.mxu0 %v1182
      %1336 = vmatmul.bf16.gmra.mxu0 %v976
      %v1337 = vpop.f32.mrf.mxu0
      %v1338 = vadd.f32 %v1289, %v1337
      %v1339 = vpop.f32.mrf.mxu0
      %v1340 = vadd.f32 %v1291, %v1339
      %1341 = vmatmul.bf16.gmra.mxu0 %v980
      %v1342 = vpop.f32.mrf.mxu0
      %v1343 = vadd.f32 %v1294, %v1342
      %v1344 = vpop.f32.mrf.mxu0
      %v1345 = vadd.f32 %v1296, %v1344
      %1346 = vmatmul.bf16.gmra.mxu0 %v984
      %v1347 = vpop.f32.mrf.mxu0
      %v1348 = vadd.f32 %v1299, %v1347
      %v1349 = vpop.f32.mrf.mxu0
      %v1350 = vadd.f32 %v1301, %v1349
      %1351 = vmatmul.bf16.gmra.mxu0 %v988
      %v1352 = vpop.f32.mrf.mxu0
      %v1353 = vadd.f32 %v1304, %v1352
      %v1354 = vpop.f32.mrf.mxu0
      %v1355 = vadd.f32 %v1306, %v1354
      %1356 = vmatmul.bf16.gmra.mxu0 %v992
      %v1357 = vpop.f32.mrf.mxu0
      %v1358 = vadd.f32 %v1309, %v1357
      %v1359 = vpop.f32.mrf.mxu0
      %v1360 = vadd.f32 %v1311, %v1359
      %1361 = vmatmul.bf16.gmra.mxu0 %v996
      %v1362 = vpop.f32.mrf.mxu0
      %v1363 = vadd.f32 %v1314, %v1362
      %v1364 = vpop.f32.mrf.mxu0
      %v1365 = vadd.f32 %v1316, %v1364
      %1366 = vmatmul.bf16.gmra.mxu0 %v1000
      %v1367 = vpop.f32.mrf.mxu0
      %v1368 = vadd.f32 %v1319, %v1367
      %v1369 = vpop.f32.mrf.mxu0
      %v1370 = vadd.f32 %v1321, %v1369
      %1371 = vmatmul.bf16.gmra.mxu0 %v1004
      %v1372 = vpop.f32.mrf.mxu0
      %v1373 = vadd.f32 %v1324, %v1372
      %v1374 = vpop.f32.mrf.mxu0
      %v1375 = vadd.f32 %v1326, %v1374
      %1376 = vdwg.mxu0
      %1377 = vmatpush.bf16.msra.mxu0 %v1197
      %1378 = vmatpush.bf16.msra.mxu0 %v1196
      %1379 = vmatpush.bf16.msra.mxu0 %v1195
      %1380 = vmatpush.bf16.msra.mxu0 %v1194
      %1381 = vmatpush.bf16.msra.mxu0 %v1193
      %1382 = vmatpush.bf16.msra.mxu0 %v1192
      %1383 = vmatpush.bf16.msra.mxu0 %v1191
      %1384 = vmatpush.bf16.msra.mxu0 %v1190
      %1385 = vmatmul.bf16.gmra.mxu0 %v977
      %v1386 = vpop.f32.mrf.mxu0
      %v1387 = vadd.f32 %v1338, %v1386
      %v1388 = vpop.f32.mrf.mxu0
      %v1389 = vadd.f32 %v1340, %v1388
      %1390 = vmatmul.bf16.gmra.mxu0 %v981
      %v1391 = vpop.f32.mrf.mxu0
      %v1392 = vadd.f32 %v1343, %v1391
      %v1393 = vpop.f32.mrf.mxu0
      %v1394 = vadd.f32 %v1345, %v1393
      %1395 = vmatmul.bf16.gmra.mxu0 %v985
      %v1396 = vpop.f32.mrf.mxu0
      %v1397 = vadd.f32 %v1348, %v1396
      %v1398 = vpop.f32.mrf.mxu0
      %v1399 = vadd.f32 %v1350, %v1398
      %1400 = vmatmul.bf16.gmra.mxu0 %v989
      %v1401 = vpop.f32.mrf.mxu0
      %v1402 = vadd.f32 %v1353, %v1401
      %v1403 = vpop.f32.mrf.mxu0
      %v1404 = vadd.f32 %v1355, %v1403
      %1405 = vmatmul.bf16.gmra.mxu0 %v993
      %v1406 = vpop.f32.mrf.mxu0
      %v1407 = vadd.f32 %v1358, %v1406
      %v1408 = vpop.f32.mrf.mxu0
      %v1409 = vadd.f32 %v1360, %v1408
      %1410 = vmatmul.bf16.gmra.mxu0 %v997
      %v1411 = vpop.f32.mrf.mxu0
      %v1412 = vadd.f32 %v1363, %v1411
      %v1413 = vpop.f32.mrf.mxu0
      %v1414 = vadd.f32 %v1365, %v1413
      %1415 = vmatmul.bf16.gmra.mxu0 %v1001
      %v1416 = vpop.f32.mrf.mxu0
      %v1417 = vadd.f32 %v1368, %v1416
      %v1418 = vpop.f32.mrf.mxu0
      %v1419 = vadd.f32 %v1370, %v1418
      %1420 = vmatmul.bf16.gmra.mxu0 %v1005
      %v1421 = vpop.f32.mrf.mxu0
      %v1422 = vadd.f32 %v1373, %v1421
      %v1423 = vpop.f32.mrf.mxu0
      %v1424 = vadd.f32 %v1375, %v1423
      %1425 = vdwg.mxu0
      %v1426 = vadd.f32 %v766, %v1387
      %v1427 = vadd.f32 %v767, %v1389
      %v1428 = vadd.f32 %v768, %v1392
      %v1429 = vadd.f32 %v769, %v1394
      %v1430 = vadd.f32 %v770, %v1397
      %v1431 = vadd.f32 %v771, %v1399
      %v1432 = vadd.f32 %v772, %v1402
      %v1433 = vadd.f32 %v773, %v1404
      %v1434 = vadd.f32 %v774, %v1407
      %v1435 = vadd.f32 %v775, %v1409
      %v1436 = vadd.f32 %v776, %v1412
      %v1437 = vadd.f32 %v777, %v1414
      %v1438 = vadd.f32 %v778, %v1417
      %v1439 = vadd.f32 %v779, %v1419
      %v1440 = vadd.f32 %v780, %v1422
      %v1441 = vadd.f32 %v781, %v1424
      %1442 = vst [vmem:[#allocation11] sm:$0xff] %v1426
      %1443 = vst [vmem:[#allocation11 + $0x8] sm:$0xff] %v1427
      %1444 = vst [vmem:[#allocation11 + $0x10] sm:$0xff] %v1428
      %1445 = vst [vmem:[#allocation11 + $0x18] sm:$0xff] %v1429
      %1446 = vst [vmem:[#allocation11 + $0x20] sm:$0xff] %v1430
      %1447 = vst [vmem:[#allocation11 + $0x28] sm:$0xff] %v1431
      %1448 = vst [vmem:[#allocation11 + $0x30] sm:$0xff] %v1432
      %1449 = vst [vmem:[#allocation11 + $0x38] sm:$0xff] %v1433
      %1450 = vst [vmem:[#allocation11 + $0x40] sm:$0xff] %v1434
      %1451 = vst [vmem:[#allocation11 + $0x48] sm:$0xff] %v1435
      %1452 = vst [vmem:[#allocation11 + $0x50] sm:$0xff] %v1436
      %1453 = vst [vmem:[#allocation11 + $0x58] sm:$0xff] %v1437
      %1454 = vst [vmem:[#allocation11 + $0x60] sm:$0xff] %v1438
      %1455 = vst [vmem:[#allocation11 + $0x68] sm:$0xff] %v1439
      %1456 = vst [vmem:[#allocation11 + $0x70] sm:$0xff] %v1440
      %1457 = vst [vmem:[#allocation11 + $0x78] sm:$0xff] %v1441
    $region29: #{tpu_custom_call.1} parent=1 // pred_fallthru
      _
    // Predicated region
    $region30: #{tpu_custom_call.1} parent=1 // pred_check
      %p1458 = pneg %p75
    $region31: #{tpu_custom_call.1} parent=1 // pred_check_branch
      %1460 = sbr.rel (%p1458) target = $region33
    $region32: #{tpu_custom_call.1} parent=1 // pred_region
      %v1461 = vld [vmem:[#allocation11] sm:$0xff]
      %v1462 = vld [vmem:[#allocation11 + $0x8] sm:$0xff]
      %v1463 = vld [vmem:[#allocation11 + $0x10] sm:$0xff]
      %v1464 = vld [vmem:[#allocation11 + $0x18] sm:$0xff]
      %v1465 = vld [vmem:[#allocation11 + $0x20] sm:$0xff]
      %v1466 = vld [vmem:[#allocation11 + $0x28] sm:$0xff]
      %v1467 = vld [vmem:[#allocation11 + $0x30] sm:$0xff]
      %v1468 = vld [vmem:[#allocation11 + $0x38] sm:$0xff]
      %v1469 = vld [vmem:[#allocation11 + $0x40] sm:$0xff]
      %v1470 = vld [vmem:[#allocation11 + $0x48] sm:$0xff]
      %v1471 = vld [vmem:[#allocation11 + $0x50] sm:$0xff]
      %v1472 = vld [vmem:[#allocation11 + $0x58] sm:$0xff]
      %v1473 = vld [vmem:[#allocation11 + $0x60] sm:$0xff]
      %v1474 = vld [vmem:[#allocation11 + $0x68] sm:$0xff]
      %v1475 = vld [vmem:[#allocation11 + $0x70] sm:$0xff]
      %v1476 = vld [vmem:[#allocation11 + $0x78] sm:$0xff]
      %v1477 = vmax.f32 %v1461, 0.0
      %v1478 = vmax.f32 %v1462, 0.0
      %v1479 = vmax.f32 %v1463, 0.0
      %v1480 = vmax.f32 %v1464, 0.0
      %v1481 = vmax.f32 %v1465, 0.0
      %v1482 = vmax.f32 %v1466, 0.0
      %v1483 = vmax.f32 %v1467, 0.0
      %v1484 = vmax.f32 %v1468, 0.0
      %v1485 = vmax.f32 %v1469, 0.0
      %v1486 = vmax.f32 %v1470, 0.0
      %v1487 = vmax.f32 %v1471, 0.0
      %v1488 = vmax.f32 %v1472, 0.0
      %v1489 = vmax.f32 %v1473, 0.0
      %v1490 = vmax.f32 %v1474, 0.0
      %v1491 = vmax.f32 %v1475, 0.0
      %v1492 = vmax.f32 %v1476, 0.0
      %1493 = vst [vmem:[#allocation11] sm:$0xff] %v1477
      %1494 = vst [vmem:[#allocation11 + $0x8] sm:$0xff] %v1478
      %1495 = vst [vmem:[#allocation11 + $0x10] sm:$0xff] %v1479
      %1496 = vst [vmem:[#allocation11 + $0x18] sm:$0xff] %v1480
      %1497 = vst [vmem:[#allocation11 + $0x20] sm:$0xff] %v1481
      %1498 = vst [vmem:[#allocation11 + $0x28] sm:$0xff] %v1482
      %1499 = vst [vmem:[#allocation11 + $0x30] sm:$0xff] %v1483
      %1500 = vst [vmem:[#allocation11 + $0x38] sm:$0xff] %v1484
      %1501 = vst [vmem:[#allocation11 + $0x40] sm:$0xff] %v1485
      %1502 = vst [vmem:[#allocation11 + $0x48] sm:$0xff] %v1486
      %1503 = vst [vmem:[#allocation11 + $0x50] sm:$0xff] %v1487
      %1504 = vst [vmem:[#allocation11 + $0x58] sm:$0xff] %v1488
      %1505 = vst [vmem:[#allocation11 + $0x60] sm:$0xff] %v1489
      %1506 = vst [vmem:[#allocation11 + $0x68] sm:$0xff] %v1490
      %1507 = vst [vmem:[#allocation11 + $0x70] sm:$0xff] %v1491
      %1508 = vst [vmem:[#allocation11 + $0x78] sm:$0xff] %v1492
    $region33: #{tpu_custom_call.1} parent=1 // pred_fallthru
      _
    // Predicated region
    $region34: #{tpu_custom_call.1} parent=1 // pred_check
      _
    $region35: #{tpu_custom_call.1} parent=1 // pred_check_branch
      %1510 = sbr.rel (0) target = $region37
    $region36: #{tpu_custom_call.1} parent=1 // pred_region
      %1512 = vsyncadd [#allocation8], 0
      %s1513 = sshll.u32 [#allocation11], 4
      %s1514 = int_to_ptr.vmem [resolvable:$true] %s1513
      %s1515 = sshll.u32 %s5, 4
      %s1516 = int_to_ptr.hbm [resolvable:$true] %s1515
      %1521 = dma.vmem_to_hbm [thread:$0]  %s1514, 2048, %s1516, [#allocation8], 128, 128, 8
    $region37: #{tpu_custom_call.1} parent=1 // pred_fallthru
      _
    // Predicated region
    $region38: #{tpu_custom_call.1} parent=1 // pred_check
      _
    $region39: #{tpu_custom_call.1} parent=1 // pred_check_branch
      %1523 = sbr.rel (0) target = $region41
    $region40: #{tpu_custom_call.1} parent=1 // pred_region
      %1525 = dma.done [#allocation8], 2048
    $region41: #{tpu_custom_call.1} parent=1 // pred_fallthru
      _
    %1526 = vsyncpa [#allocation7], 1
    %1527 = vsyncpa [#allocation10], 1
    %1528 = vsyncpa [#allocation8], 1

</llo_original>
